<compile_context>
chip_gen: v7x
topology: tpu7x:2x2x1
jax: 0.10.0
libtpu: 0.0.40
codegen_flags: <defaults>
</compile_context>

<pallas_src>
import functools

import jax
import jax.numpy as jnp
from jax import lax
from jax.experimental import pallas as pl
from jax.experimental.pallas import tpu as pltpu

BN_EPS = 1e-5
LEAKY_SLOPE = 0.2


def _stack_kernel(x_ref, w_ref, p_ref, o_ref, xp_ref, *,
                  dilations, seq_len, batch, channels, pad):
    """Fused forward of the whole Block stack.

    x_ref  : (N, L, C)          input activations (f32)
    w_ref  : (B, 3, C, C)       fused (conv1 o conv2) weights, bf16
    p_ref  : (B, 3, C)          rows: [fused bias, gamma, beta] (f32)
    o_ref  : (N, L, C)          output (f32)
    xp_ref : (N, L + 2*pad, C)  VMEM scratch, zero-padded activations, resident
                                across blocks (f32)
    """
    N, L, C, P = batch, seq_len, channels, pad
    NL = N * L
    n_blocks = len(dilations)
    inv_cnt = 1.0 / float(NL)

    # ---- zero the pad rows ONCE; blocks only ever touch the live region -----
    zeros_pad = jnp.zeros((N, P, C), jnp.float32)
    xp_ref[:, 0:P, :] = zeros_pad
    xp_ref[:, P + L:P + L + P, :] = zeros_pad
    xp_ref[:, P:P + L, :] = x_ref[...]

    for b, d in enumerate(dilations):
        pb = p_ref[b]                              # (3, C)
        bias = pb[0:1, :]                          # fused conv bias
        gamma = pb[1:2, :]
        beta = pb[2:3, :]

        # ---- dilated conv (k=3) fused with the 1x1 conv: 3 MXU matmuls ------
        # Center tap doubles as the residual (loaded once, f32).
        center = xp_ref[:, P:P + L, :].reshape(NL, C)
        left = xp_ref[:, P - d:P - d + L, :].reshape(NL, C)
        right = xp_ref[:, P + d:P + d + L, :].reshape(NL, C)

        acc = jnp.dot(center.astype(jnp.bfloat16), w_ref[b, 1],
                      preferred_element_type=jnp.float32)
        acc = acc + jnp.dot(left.astype(jnp.bfloat16), w_ref[b, 0],
                            preferred_element_type=jnp.float32)
        acc = acc + jnp.dot(right.astype(jnp.bfloat16), w_ref[b, 2],
                            preferred_element_type=jnp.float32)

        # ---- + bias + residual, leaky_relu(0.2) ------------------------------
        z = acc + bias + center
        z = jnp.maximum(z, LEAKY_SLOPE * z)

        # ---- BatchNorm1d batch stats: exact two-pass variance ----------------
        mean = jnp.sum(z, axis=0, keepdims=True) * inv_cnt        # (1, C)
        diff = z - mean
        var = jnp.sum(diff * diff, axis=0, keepdims=True) * inv_cnt
        scale = lax.rsqrt(var + BN_EPS) * gamma                   # (1, C)
        zn = diff * scale + beta                                  # single FMA

        if b + 1 == n_blocks:
            o_ref[...] = zn.reshape(N, L, C)
        else:
            # next block's input: only the live region (pads already zero)
            xp_ref[:, P:P + L, :] = zn.reshape(N, L, C)


def stack_forward(x_ncl, stack_params, dilations):
    """x_ncl: (N, C, L) like PyTorch.  Returns (N, C, L)."""
    dilations = tuple(int(d) for d in dilations)
    x = jnp.transpose(x_ncl, (0, 2, 1)).astype(jnp.float32)       # -> (N, L, C)
    N, L, C = x.shape
    B = len(dilations)
    d_max = max(dilations)
    P = max(8, ((d_max + 7) // 8) * 8)        # sublane-aligned pad region

    # ---- fold conv2 (1x1) into conv1 (k=3, dilated); cast weights to bf16 ---
    w_all, p_all = [], []
    for prm in stack_params:
        wf = jnp.einsum("kio,om->kim", prm["w1"], prm["w2"])      # (3, C, C)
        bf = prm["b1"] @ prm["w2"] + prm["b2"]                    # (1, C)
        w_all.append(wf)
        p_all.append(jnp.concatenate([bf, prm["gamma"], prm["beta"]], axis=0))
    w_all = jnp.stack(w_all).astype(jnp.bfloat16)                 # (B, 3, C, C)
    p_all = jnp.stack(p_all).astype(jnp.float32)                  # (B, 3, C)

    kernel = functools.partial(_stack_kernel, dilations=dilations, seq_len=L,
                               batch=N, channels=C, pad=P)
    vmem = pl.BlockSpec(memory_space=pltpu.MemorySpace.VMEM)

    # ---- explicit VMEM budget sized from actual residency (with headroom) ---
    resident = (x.size * 4 + int(w_all.size) * 2 + int(p_all.size) * 4
                + N * L * C * 4                       # output
                + N * (L + 2 * P) * C * 4)            # padded scratch
    temps = 6 * N * L * C * 4                         # taps / z / diff live values
    vmem_bytes = int(min(max(4 * (resident + temps), 32 << 20), 56 << 20))

    flops = 2 * B * 3 * N * L * C * C + 12 * B * N * L * C
    bytes_accessed = 2 * N * L * C * 4 + int(w_all.size) * 2 + int(p_all.size) * 4
    cost = pl.CostEstimate(flops=int(flops), transcendentals=int(B * C),
                           bytes_accessed=int(bytes_accessed))

    out = pl.pallas_call(
        kernel,
        out_shape=jax.ShapeDtypeStruct((N, L, C), jnp.float32),
        in_specs=[vmem, vmem, vmem],
        out_specs=vmem,
        scratch_shapes=[pltpu.VMEM((N, L + 2 * P, C), jnp.float32)],
        compiler_params=pltpu.CompilerParams(vmem_limit_bytes=vmem_bytes),
        cost_estimate=cost,
    )(x, w_all, p_all)

    return jnp.transpose(out, (0, 2, 1))                          # -> (N, C, L)


# ----------------------------- parameter init --------------------------------
def init_block_params(key, channels):
    """Deterministic init mimicking PyTorch Conv1d default (uniform +/- 1/sqrt(fan_in))."""
    k1, k2, k3, k4 = jax.random.split(key, 4)
    bound1 = 1.0 / float(jnp.sqrt(channels * 3.0))
    bound2 = 1.0 / float(jnp.sqrt(float(channels)))
    return dict(
        w1=jax.random.uniform(k1, (3, channels, channels), jnp.float32, -bound1, bound1),
        b1=jax.random.uniform(k2, (1, channels), jnp.float32, -bound1, bound1),
        w2=jax.random.uniform(k3, (channels, channels), jnp.float32, -bound2, bound2),
        b2=jax.random.uniform(k4, (1, channels), jnp.float32, -bound2, bound2),
        gamma=jnp.ones((1, channels), jnp.float32),
        beta=jnp.zeros((1, channels), jnp.float32),
    )


# ----------------------------- pure-JAX reference ----------------------------
# Uses the UNFUSED weights and two-pass variance so it also validates the
# wrapper-side conv folding and the in-kernel BN statistics.
def _block_reference(x_ncl, params, d):
    w1_t = jnp.transpose(params["w1"], (2, 1, 0))                 # (C_out, C_in, 3)
    y = lax.conv_general_dilated(
        x_ncl, w1_t, window_strides=(1,), padding=[(d, d)], rhs_dilation=(d,),
        dimension_numbers=("NCH", "OIH", "NCH"))
    y = y + params["b1"].reshape(1, -1, 1)
    w2_t = jnp.transpose(params["w2"], (1, 0))[:, :, None]        # (C_out, C_in, 1)
    z = lax.conv_general_dilated(
        y, w2_t, window_strides=(1,), padding=[(0, 0)],
        dimension_numbers=("NCH", "OIH", "NCH"))
    z = z + params["b2"].reshape(1, -1, 1)
    z = z + x_ncl
    z = jnp.where(z >= 0, z, LEAKY_SLOPE * z)
    mean = jnp.mean(z, axis=(0, 2), keepdims=True)
    var = jnp.mean((z - mean) ** 2, axis=(0, 2), keepdims=True)
    zn = (z - mean) * lax.rsqrt(var + BN_EPS)
    return zn * params["gamma"].reshape(1, -1, 1) + params["beta"].reshape(1, -1, 1)


def _stack_reference(x_ncl, stack_params, dilations):
    x = x_ncl
    for params, d in zip(stack_params, dilations):
        x = _block_reference(x, params, d)
    return x


# ---------------------------------- main --------------------------------------
if __name__ == "__main__":
    # C = 128 keeps the channel (lane) axis dense; small but representative.
    N, C, L = 2, 128, 64
    dilations = (1, 2, 4)

    key = jax.random.PRNGKey(0)
    kx, kp = jax.random.split(key)
    x = jax.random.normal(kx, (N, C, L), jnp.float32)

    block_keys = jax.random.split(kp, len(dilations))
    stack_params = [init_block_params(k, C) for k in block_keys]

    out = stack_forward(x, stack_params, dilations)
    out = jax.block_until_ready(out)
    assert out.shape == (N, C, L), out.shape

    # sanity check against a pure-JAX f32 reference (unfused math); tolerance
    # covers the bf16 matmul operands (f32 accumulation) across 3 blocks.
    ref = jax.block_until_ready(_stack_reference(x, stack_params, dilations))
    assert jnp.allclose(out, ref, atol=3e-2, rtol=3e-2), float(jnp.max(jnp.abs(out - ref)))

    # TODO(synk): BatchNorm running_mean/running_var buffer updates (training side
    # effect) are not modeled; only the forward output (batch-stat normalization) is.
    print("KERNEL_OK")
</pallas_src>

<mosaic_0001>
module attributes {stable_mosaic.version = 11 : i64} {
  func.func @_stack_kernel(%arg0: memref<2x64x128xf32, #tpu.memory_space<vmem>>, %arg1: memref<3x3x128x128xbf16, #tpu.memory_space<vmem>>, %arg2: memref<3x3x128xf32, #tpu.memory_space<vmem>>, %arg3: memref<2x64x128xf32, #tpu.memory_space<vmem>>, %arg4: memref<2x80x128xf32, #tpu.memory_space<vmem>>) attributes {dimension_semantics = [], scalar_prefetch = 0 : i64, scratch_operands = 1 : i64, tpu.core_type = #tpu.core_type<tc>} {
    %cst = arith.constant 0.000000e+00 : f32
    %0 = vector.broadcast %cst : f32 to vector<2x8x128xf32>
    %c0 = arith.constant 0 : index
    %c0_0 = arith.constant 0 : index
    %c0_1 = arith.constant 0 : index
    %1 = vector.load %arg4[%c0, %c0_0, %c0_1] : memref<2x80x128xf32, #tpu.memory_space<vmem>>, vector<2x8x128xf32>
    tpu.vector_store %arg4[%c0, %c0_0, %c0_1], %0 {strides = array<i32>} : memref<2x80x128xf32, #tpu.memory_space<vmem>>, vector<2x8x128xf32>,
    %c0_2 = arith.constant 0 : index
    %c72 = arith.constant 72 : index
    %c0_3 = arith.constant 0 : index
    %2 = vector.load %arg4[%c0_2, %c72, %c0_3] : memref<2x80x128xf32, #tpu.memory_space<vmem>>, vector<2x8x128xf32>
    tpu.vector_store %arg4[%c0_2, %c72, %c0_3], %0 {strides = array<i32>} : memref<2x80x128xf32, #tpu.memory_space<vmem>>, vector<2x8x128xf32>,
    %c0_4 = arith.constant 0 : index
    %c0_5 = arith.constant 0 : index
    %c0_6 = arith.constant 0 : index
    %3 = vector.load %arg0[%c0_4, %c0_5, %c0_6] : memref<2x64x128xf32, #tpu.memory_space<vmem>>, vector<2x64x128xf32>
    %c0_7 = arith.constant 0 : index
    %c8 = arith.constant 8 : index
    %c0_8 = arith.constant 0 : index
    %4 = vector.load %arg4[%c0_7, %c8, %c0_8] : memref<2x80x128xf32, #tpu.memory_space<vmem>>, vector<2x64x128xf32>
    tpu.vector_store %arg4[%c0_7, %c8, %c0_8], %3 {strides = array<i32>} : memref<2x80x128xf32, #tpu.memory_space<vmem>>, vector<2x64x128xf32>,
    %c0_9 = arith.constant 0 : index
    %c0_10 = arith.constant 0 : index
    %c0_11 = arith.constant 0 : index
    %5 = vector.load %arg2[%c0_9, %c0_10, %c0_11] : memref<3x3x128xf32, #tpu.memory_space<vmem>>, vector<1x3x128xf32>
    %6 = vector.shape_cast %5 : vector<1x3x128xf32> to vector<3x128xf32>
    %7 = vector.extract_strided_slice %6 {offsets = [0, 0], sizes = [1, 128], strides = [1, 1]} : vector<3x128xf32> to vector<1x128xf32>
    %8 = vector.extract_strided_slice %6 {offsets = [1, 0], sizes = [1, 128], strides = [1, 1]} : vector<3x128xf32> to vector<1x128xf32>
    %9 = vector.extract_strided_slice %6 {offsets = [2, 0], sizes = [1, 128], strides = [1, 1]} : vector<3x128xf32> to vector<1x128xf32>
    %c0_12 = arith.constant 0 : index
    %c8_13 = arith.constant 8 : index
    %c0_14 = arith.constant 0 : index
    %10 = vector.load %arg4[%c0_12, %c8_13, %c0_14] : memref<2x80x128xf32, #tpu.memory_space<vmem>>, vector<2x64x128xf32>
    %11 = vector.shape_cast %10 : vector<2x64x128xf32> to vector<128x128xf32>
    %c0_15 = arith.constant 0 : index
    %c7 = arith.constant 7 : index
    %c0_16 = arith.constant 0 : index
    %12 = vector.load %arg4[%c0_15, %c7, %c0_16] : memref<2x80x128xf32, #tpu.memory_space<vmem>>, vector<2x64x128xf32>
    %13 = vector.shape_cast %12 : vector<2x64x128xf32> to vector<128x128xf32>
    %c0_17 = arith.constant 0 : index
    %c9 = arith.constant 9 : index
    %c0_18 = arith.constant 0 : index
    %14 = vector.load %arg4[%c0_17, %c9, %c0_18] : memref<2x80x128xf32, #tpu.memory_space<vmem>>, vector<2x64x128xf32>
    %15 = vector.shape_cast %14 : vector<2x64x128xf32> to vector<128x128xf32>
    %16 = arith.truncf %11 : vector<128x128xf32> to vector<128x128xbf16>
    %c0_19 = arith.constant 0 : index
    %c1 = arith.constant 1 : index
    %c0_20 = arith.constant 0 : index
    %c0_21 = arith.constant 0 : index
    %17 = vector.load %arg1[%c0_19, %c1, %c0_20, %c0_21] : memref<3x3x128x128xbf16, #tpu.memory_space<vmem>>, vector<1x1x128x128xbf16>
    %18 = vector.shape_cast %17 : vector<1x1x128x128xbf16> to vector<128x128xbf16>
    %cst_22 = arith.constant dense<0.000000e+00> : vector<128x128xf32>
    %19 = tpu.matmul %16, %18, %cst_22 {dimension_numbers = #tpu.dot_dimension_numbers<[1], [0], [0], [1], [0, 0, 1, 1], [], []>} : vector<128x128xbf16>, vector<128x128xbf16>, vector<128x128xf32> -> vector<128x128xf32>
    %20 = arith.truncf %13 : vector<128x128xf32> to vector<128x128xbf16>
    %c0_23 = arith.constant 0 : index
    %c0_24 = arith.constant 0 : index
    %c0_25 = arith.constant 0 : index
    %c0_26 = arith.constant 0 : index
    %21 = vector.load %arg1[%c0_23, %c0_24, %c0_25, %c0_26] : memref<3x3x128x128xbf16, #tpu.memory_space<vmem>>, vector<1x1x128x128xbf16>
    %22 = vector.shape_cast %21 : vector<1x1x128x128xbf16> to vector<128x128xbf16>
    %cst_27 = arith.constant dense<0.000000e+00> : vector<128x128xf32>
    %23 = tpu.matmul %20, %22, %cst_27 {dimension_numbers = #tpu.dot_dimension_numbers<[1], [0], [0], [1], [0, 0, 1, 1], [], []>} : vector<128x128xbf16>, vector<128x128xbf16>, vector<128x128xf32> -> vector<128x128xf32>
    %24 = arith.addf %19, %23 : vector<128x128xf32>
    %25 = arith.truncf %15 : vector<128x128xf32> to vector<128x128xbf16>
    %c0_28 = arith.constant 0 : index
    %c2 = arith.constant 2 : index
    %c0_29 = arith.constant 0 : index
    %c0_30 = arith.constant 0 : index
    %26 = vector.load %arg1[%c0_28, %c2, %c0_29, %c0_30] : memref<3x3x128x128xbf16, #tpu.memory_space<vmem>>, vector<1x1x128x128xbf16>
    %27 = vector.shape_cast %26 : vector<1x1x128x128xbf16> to vector<128x128xbf16>
    %cst_31 = arith.constant dense<0.000000e+00> : vector<128x128xf32>
    %28 = tpu.matmul %25, %27, %cst_31 {dimension_numbers = #tpu.dot_dimension_numbers<[1], [0], [0], [1], [0, 0, 1, 1], [], []>} : vector<128x128xbf16>, vector<128x128xbf16>, vector<128x128xf32> -> vector<128x128xf32>
    %29 = arith.addf %24, %28 : vector<128x128xf32>
    %30 = vector.broadcast %7 : vector<1x128xf32> to vector<128x128xf32>
    %31 = arith.addf %29, %30 : vector<128x128xf32>
    %32 = arith.addf %31, %11 : vector<128x128xf32>
    %cst_32 = arith.constant 2.000000e-01 : f32
    %33 = vector.broadcast %cst_32 : f32 to vector<128x128xf32>
    %34 = arith.mulf %33, %32 : vector<128x128xf32>
    %35 = arith.maximumf %32, %34 : vector<128x128xf32>
    %cst_33 = arith.constant dense<0.000000e+00> : vector<128xf32>
    %36 = vector.multi_reduction <add>, %35, %cst_33 [0] : vector<128x128xf32> to vector<128xf32>
    %37 = vector.shape_cast %36 : vector<128xf32> to vector<1x128xf32>
    %cst_34 = arith.constant 7.812500e-03 : f32
    %38 = vector.broadcast %cst_34 : f32 to vector<1x128xf32>
    %39 = arith.mulf %37, %38 : vector<1x128xf32>
    %40 = vector.broadcast %39 : vector<1x128xf32> to vector<128x128xf32>
    %41 = arith.subf %35, %40 : vector<128x128xf32>
    %42 = arith.mulf %41, %41 : vector<128x128xf32>
    %cst_35 = arith.constant dense<0.000000e+00> : vector<128xf32>
    %43 = vector.multi_reduction <add>, %42, %cst_35 [0] : vector<128x128xf32> to vector<128xf32>
    %44 = vector.shape_cast %43 : vector<128xf32> to vector<1x128xf32>
    %cst_36 = arith.constant 7.812500e-03 : f32
    %45 = vector.broadcast %cst_36 : f32 to vector<1x128xf32>
    %46 = arith.mulf %44, %45 : vector<1x128xf32>
    %cst_37 = arith.constant 9.99999974E-6 : f32
    %47 = vector.broadcast %cst_37 : f32 to vector<1x128xf32>
    %48 = arith.addf %46, %47 : vector<1x128xf32>
    %49 = math.rsqrt %48 : vector<1x128xf32>
    %50 = arith.mulf %49, %8 : vector<1x128xf32>
    %51 = vector.broadcast %50 : vector<1x128xf32> to vector<128x128xf32>
    %52 = arith.mulf %41, %51 : vector<128x128xf32>
    %53 = vector.broadcast %9 : vector<1x128xf32> to vector<128x128xf32>
    %54 = arith.addf %52, %53 : vector<128x128xf32>
    %55 = vector.shape_cast %54 : vector<128x128xf32> to vector<2x64x128xf32>
    %c0_38 = arith.constant 0 : index
    %c8_39 = arith.constant 8 : index
    %c0_40 = arith.constant 0 : index
    %56 = vector.load %arg4[%c0_38, %c8_39, %c0_40] : memref<2x80x128xf32, #tpu.memory_space<vmem>>, vector<2x64x128xf32>
    tpu.vector_store %arg4[%c0_38, %c8_39, %c0_40], %55 {strides = array<i32>} : memref<2x80x128xf32, #tpu.memory_space<vmem>>, vector<2x64x128xf32>,
    %c1_41 = arith.constant 1 : index
    %c0_42 = arith.constant 0 : index
    %c0_43 = arith.constant 0 : index
    %57 = vector.load %arg2[%c1_41, %c0_42, %c0_43] : memref<3x3x128xf32, #tpu.memory_space<vmem>>, vector<1x3x128xf32>
    %58 = vector.shape_cast %57 : vector<1x3x128xf32> to vector<3x128xf32>
    %59 = vector.extract_strided_slice %58 {offsets = [0, 0], sizes = [1, 128], strides = [1, 1]} : vector<3x128xf32> to vector<1x128xf32>
    %60 = vector.extract_strided_slice %58 {offsets = [1, 0], sizes = [1, 128], strides = [1, 1]} : vector<3x128xf32> to vector<1x128xf32>
    %61 = vector.extract_strided_slice %58 {offsets = [2, 0], sizes = [1, 128], strides = [1, 1]} : vector<3x128xf32> to vector<1x128xf32>
    %c0_44 = arith.constant 0 : index
    %c8_45 = arith.constant 8 : index
    %c0_46 = arith.constant 0 : index
    %62 = vector.load %arg4[%c0_44, %c8_45, %c0_46] : memref<2x80x128xf32, #tpu.memory_space<vmem>>, vector<2x64x128xf32>
    %63 = vector.shape_cast %62 : vector<2x64x128xf32> to vector<128x128xf32>
    %c0_47 = arith.constant 0 : index
    %c6 = arith.constant 6 : index
    %c0_48 = arith.constant 0 : index
    %64 = vector.load %arg4[%c0_47, %c6, %c0_48] : memref<2x80x128xf32, #tpu.memory_space<vmem>>, vector<2x64x128xf32>
    %65 = vector.shape_cast %64 : vector<2x64x128xf32> to vector<128x128xf32>
    %c0_49 = arith.constant 0 : index
    %c10 = arith.constant 10 : index
    %c0_50 = arith.constant 0 : index
    %66 = vector.load %arg4[%c0_49, %c10, %c0_50] : memref<2x80x128xf32, #tpu.memory_space<vmem>>, vector<2x64x128xf32>
    %67 = vector.shape_cast %66 : vector<2x64x128xf32> to vector<128x128xf32>
    %68 = arith.truncf %63 : vector<128x128xf32> to vector<128x128xbf16>
    %c1_51 = arith.constant 1 : index
    %c1_52 = arith.constant 1 : index
    %c0_53 = arith.constant 0 : index
    %c0_54 = arith.constant 0 : index
    %69 = vector.load %arg1[%c1_51, %c1_52, %c0_53, %c0_54] : memref<3x3x128x128xbf16, #tpu.memory_space<vmem>>, vector<1x1x128x128xbf16>
    %70 = vector.shape_cast %69 : vector<1x1x128x128xbf16> to vector<128x128xbf16>
    %cst_55 = arith.constant dense<0.000000e+00> : vector<128x128xf32>
    %71 = tpu.matmul %68, %70, %cst_55 {dimension_numbers = #tpu.dot_dimension_numbers<[1], [0], [0], [1], [0, 0, 1, 1], [], []>} : vector<128x128xbf16>, vector<128x128xbf16>, vector<128x128xf32> -> vector<128x128xf32>
    %72 = arith.truncf %65 : vector<128x128xf32> to vector<128x128xbf16>
    %c1_56 = arith.constant 1 : index
    %c0_57 = arith.constant 0 : index
    %c0_58 = arith.constant 0 : index
    %c0_59 = arith.constant 0 : index
    %73 = vector.load %arg1[%c1_56, %c0_57, %c0_58, %c0_59] : memref<3x3x128x128xbf16, #tpu.memory_space<vmem>>, vector<1x1x128x128xbf16>
    %74 = vector.shape_cast %73 : vector<1x1x128x128xbf16> to vector<128x128xbf16>
    %cst_60 = arith.constant dense<0.000000e+00> : vector<128x128xf32>
    %75 = tpu.matmul %72, %74, %cst_60 {dimension_numbers = #tpu.dot_dimension_numbers<[1], [0], [0], [1], [0, 0, 1, 1], [], []>} : vector<128x128xbf16>, vector<128x128xbf16>, vector<128x128xf32> -> vector<128x128xf32>
    %76 = arith.addf %71, %75 : vector<128x128xf32>
    %77 = arith.truncf %67 : vector<128x128xf32> to vector<128x128xbf16>
    %c1_61 = arith.constant 1 : index
    %c2_62 = arith.constant 2 : index
    %c0_63 = arith.constant 0 : index
    %c0_64 = arith.constant 0 : index
    %78 = vector.load %arg1[%c1_61, %c2_62, %c0_63, %c0_64] : memref<3x3x128x128xbf16, #tpu.memory_space<vmem>>, vector<1x1x128x128xbf16>
    %79 = vector.shape_cast %78 : vector<1x1x128x128xbf16> to vector<128x128xbf16>
    %cst_65 = arith.constant dense<0.000000e+00> : vector<128x128xf32>
    %80 = tpu.matmul %77, %79, %cst_65 {dimension_numbers = #tpu.dot_dimension_numbers<[1], [0], [0], [1], [0, 0, 1, 1], [], []>} : vector<128x128xbf16>, vector<128x128xbf16>, vector<128x128xf32> -> vector<128x128xf32>
    %81 = arith.addf %76, %80 : vector<128x128xf32>
    %82 = vector.broadcast %59 : vector<1x128xf32> to vector<128x128xf32>
    %83 = arith.addf %81, %82 : vector<128x128xf32>
    %84 = arith.addf %83, %63 : vector<128x128xf32>
    %cst_66 = arith.constant 2.000000e-01 : f32
    %85 = vector.broadcast %cst_66 : f32 to vector<128x128xf32>
    %86 = arith.mulf %85, %84 : vector<128x128xf32>
    %87 = arith.maximumf %84, %86 : vector<128x128xf32>
    %cst_67 = arith.constant dense<0.000000e+00> : vector<128xf32>
    %88 = vector.multi_reduction <add>, %87, %cst_67 [0] : vector<128x128xf32> to vector<128xf32>
    %89 = vector.shape_cast %88 : vector<128xf32> to vector<1x128xf32>
    %cst_68 = arith.constant 7.812500e-03 : f32
    %90 = vector.broadcast %cst_68 : f32 to vector<1x128xf32>
    %91 = arith.mulf %89, %90 : vector<1x128xf32>
    %92 = vector.broadcast %91 : vector<1x128xf32> to vector<128x128xf32>
    %93 = arith.subf %87, %92 : vector<128x128xf32>
    %94 = arith.mulf %93, %93 : vector<128x128xf32>
    %cst_69 = arith.constant dense<0.000000e+00> : vector<128xf32>
    %95 = vector.multi_reduction <add>, %94, %cst_69 [0] : vector<128x128xf32> to vector<128xf32>
    %96 = vector.shape_cast %95 : vector<128xf32> to vector<1x128xf32>
    %cst_70 = arith.constant 7.812500e-03 : f32
    %97 = vector.broadcast %cst_70 : f32 to vector<1x128xf32>
    %98 = arith.mulf %96, %97 : vector<1x128xf32>
    %cst_71 = arith.constant 9.99999974E-6 : f32
    %99 = vector.broadcast %cst_71 : f32 to vector<1x128xf32>
    %100 = arith.addf %98, %99 : vector<1x128xf32>
    %101 = math.rsqrt %100 : vector<1x128xf32>
    %102 = arith.mulf %101, %60 : vector<1x128xf32>
    %103 = vector.broadcast %102 : vector<1x128xf32> to vector<128x128xf32>
    %104 = arith.mulf %93, %103 : vector<128x128xf32>
    %105 = vector.broadcast %61 : vector<1x128xf32> to vector<128x128xf32>
    %106 = arith.addf %104, %105 : vector<128x128xf32>
    %107 = vector.shape_cast %106 : vector<128x128xf32> to vector<2x64x128xf32>
    %c0_72 = arith.constant 0 : index
    %c8_73 = arith.constant 8 : index
    %c0_74 = arith.constant 0 : index
    %108 = vector.load %arg4[%c0_72, %c8_73, %c0_74] : memref<2x80x128xf32, #tpu.memory_space<vmem>>, vector<2x64x128xf32>
    tpu.vector_store %arg4[%c0_72, %c8_73, %c0_74], %107 {strides = array<i32>} : memref<2x80x128xf32, #tpu.memory_space<vmem>>, vector<2x64x128xf32>,
    %c2_75 = arith.constant 2 : index
    %c0_76 = arith.constant 0 : index
    %c0_77 = arith.constant 0 : index
    %109 = vector.load %arg2[%c2_75, %c0_76, %c0_77] : memref<3x3x128xf32, #tpu.memory_space<vmem>>, vector<1x3x128xf32>
    %110 = vector.shape_cast %109 : vector<1x3x128xf32> to vector<3x128xf32>
    %111 = vector.extract_strided_slice %110 {offsets = [0, 0], sizes = [1, 128], strides = [1, 1]} : vector<3x128xf32> to vector<1x128xf32>
    %112 = vector.extract_strided_slice %110 {offsets = [1, 0], sizes = [1, 128], strides = [1, 1]} : vector<3x128xf32> to vector<1x128xf32>
    %113 = vector.extract_strided_slice %110 {offsets = [2, 0], sizes = [1, 128], strides = [1, 1]} : vector<3x128xf32> to vector<1x128xf32>
    %c0_78 = arith.constant 0 : index
    %c8_79 = arith.constant 8 : index
    %c0_80 = arith.constant 0 : index
    %114 = vector.load %arg4[%c0_78, %c8_79, %c0_80] : memref<2x80x128xf32, #tpu.memory_space<vmem>>, vector<2x64x128xf32>
    %115 = vector.shape_cast %114 : vector<2x64x128xf32> to vector<128x128xf32>
    %c0_81 = arith.constant 0 : index
    %c4 = arith.constant 4 : index
    %c0_82 = arith.constant 0 : index
    %116 = vector.load %arg4[%c0_81, %c4, %c0_82] : memref<2x80x128xf32, #tpu.memory_space<vmem>>, vector<2x64x128xf32>
    %117 = vector.shape_cast %116 : vector<2x64x128xf32> to vector<128x128xf32>
    %c0_83 = arith.constant 0 : index
    %c12 = arith.constant 12 : index
    %c0_84 = arith.constant 0 : index
    %118 = vector.load %arg4[%c0_83, %c12, %c0_84] : memref<2x80x128xf32, #tpu.memory_space<vmem>>, vector<2x64x128xf32>
    %119 = vector.shape_cast %118 : vector<2x64x128xf32> to vector<128x128xf32>
    %120 = arith.truncf %115 : vector<128x128xf32> to vector<128x128xbf16>
    %c2_85 = arith.constant 2 : index
    %c1_86 = arith.constant 1 : index
    %c0_87 = arith.constant 0 : index
    %c0_88 = arith.constant 0 : index
    %121 = vector.load %arg1[%c2_85, %c1_86, %c0_87, %c0_88] : memref<3x3x128x128xbf16, #tpu.memory_space<vmem>>, vector<1x1x128x128xbf16>
    %122 = vector.shape_cast %121 : vector<1x1x128x128xbf16> to vector<128x128xbf16>
    %cst_89 = arith.constant dense<0.000000e+00> : vector<128x128xf32>
    %123 = tpu.matmul %120, %122, %cst_89 {dimension_numbers = #tpu.dot_dimension_numbers<[1], [0], [0], [1], [0, 0, 1, 1], [], []>} : vector<128x128xbf16>, vector<128x128xbf16>, vector<128x128xf32> -> vector<128x128xf32>
    %124 = arith.truncf %117 : vector<128x128xf32> to vector<128x128xbf16>
    %c2_90 = arith.constant 2 : index
    %c0_91 = arith.constant 0 : index
    %c0_92 = arith.constant 0 : index
    %c0_93 = arith.constant 0 : index
    %125 = vector.load %arg1[%c2_90, %c0_91, %c0_92, %c0_93] : memref<3x3x128x128xbf16, #tpu.memory_space<vmem>>, vector<1x1x128x128xbf16>
    %126 = vector.shape_cast %125 : vector<1x1x128x128xbf16> to vector<128x128xbf16>
    %cst_94 = arith.constant dense<0.000000e+00> : vector<128x128xf32>
    %127 = tpu.matmul %124, %126, %cst_94 {dimension_numbers = #tpu.dot_dimension_numbers<[1], [0], [0], [1], [0, 0, 1, 1], [], []>} : vector<128x128xbf16>, vector<128x128xbf16>, vector<128x128xf32> -> vector<128x128xf32>
    %128 = arith.addf %123, %127 : vector<128x128xf32>
    %129 = arith.truncf %119 : vector<128x128xf32> to vector<128x128xbf16>
    %c2_95 = arith.constant 2 : index
    %c2_96 = arith.constant 2 : index
    %c0_97 = arith.constant 0 : index
    %c0_98 = arith.constant 0 : index
    %130 = vector.load %arg1[%c2_95, %c2_96, %c0_97, %c0_98] : memref<3x3x128x128xbf16, #tpu.memory_space<vmem>>, vector<1x1x128x128xbf16>
    %131 = vector.shape_cast %130 : vector<1x1x128x128xbf16> to vector<128x128xbf16>
    %cst_99 = arith.constant dense<0.000000e+00> : vector<128x128xf32>
    %132 = tpu.matmul %129, %131, %cst_99 {dimension_numbers = #tpu.dot_dimension_numbers<[1], [0], [0], [1], [0, 0, 1, 1], [], []>} : vector<128x128xbf16>, vector<128x128xbf16>, vector<128x128xf32> -> vector<128x128xf32>
    %133 = arith.addf %128, %132 : vector<128x128xf32>
    %134 = vector.broadcast %111 : vector<1x128xf32> to vector<128x128xf32>
    %135 = arith.addf %133, %134 : vector<128x128xf32>
    %136 = arith.addf %135, %115 : vector<128x128xf32>
    %cst_100 = arith.constant 2.000000e-01 : f32
    %137 = vector.broadcast %cst_100 : f32 to vector<128x128xf32>
    %138 = arith.mulf %137, %136 : vector<128x128xf32>
    %139 = arith.maximumf %136, %138 : vector<128x128xf32>
    %cst_101 = arith.constant dense<0.000000e+00> : vector<128xf32>
    %140 = vector.multi_reduction <add>, %139, %cst_101 [0] : vector<128x128xf32> to vector<128xf32>
    %141 = vector.shape_cast %140 : vector<128xf32> to vector<1x128xf32>
    %cst_102 = arith.constant 7.812500e-03 : f32
    %142 = vector.broadcast %cst_102 : f32 to vector<1x128xf32>
    %143 = arith.mulf %141, %142 : vector<1x128xf32>
    %144 = vector.broadcast %143 : vector<1x128xf32> to vector<128x128xf32>
    %145 = arith.subf %139, %144 : vector<128x128xf32>
    %146 = arith.mulf %145, %145 : vector<128x128xf32>
    %cst_103 = arith.constant dense<0.000000e+00> : vector<128xf32>
    %147 = vector.multi_reduction <add>, %146, %cst_103 [0] : vector<128x128xf32> to vector<128xf32>
    %148 = vector.shape_cast %147 : vector<128xf32> to vector<1x128xf32>
    %cst_104 = arith.constant 7.812500e-03 : f32
    %149 = vector.broadcast %cst_104 : f32 to vector<1x128xf32>
    %150 = arith.mulf %148, %149 : vector<1x128xf32>
    %cst_105 = arith.constant 9.99999974E-6 : f32
    %151 = vector.broadcast %cst_105 : f32 to vector<1x128xf32>
    %152 = arith.addf %150, %151 : vector<1x128xf32>
    %153 = math.rsqrt %152 : vector<1x128xf32>
    %154 = arith.mulf %153, %112 : vector<1x128xf32>
    %155 = vector.broadcast %154 : vector<1x128xf32> to vector<128x128xf32>
    %156 = arith.mulf %145, %155 : vector<128x128xf32>
    %157 = vector.broadcast %113 : vector<1x128xf32> to vector<128x128xf32>
    %158 = arith.addf %156, %157 : vector<128x128xf32>
    %159 = vector.shape_cast %158 : vector<128x128xf32> to vector<2x64x128xf32>
    %c0_106 = arith.constant 0 : index
    %c0_107 = arith.constant 0 : index
    %c0_108 = arith.constant 0 : index
    %160 = vector.load %arg3[%c0_106, %c0_107, %c0_108] : memref<2x64x128xf32, #tpu.memory_space<vmem>>, vector<2x64x128xf32>
    tpu.vector_store %arg3[%c0_106, %c0_107, %c0_108], %159 {strides = array<i32>} : memref<2x64x128xf32, #tpu.memory_space<vmem>>, vector<2x64x128xf32>,
    return
  }
}

</mosaic_0001>

<llo_original>
// kernel: tpu_custom_call.1
$region0: #{tpu_custom_call.1}
  #allocation0 [shape = 'u32[]', space=smem, size = 0x4, offset = 0x4, fixed_abs, tag = 'smem constant byte address 0x4 - core index']
  #allocation1 [shape = 'u32[144,128]{1,0:T(1,128)}', space=vmem, size = 0x12000, scoped, tag = 'internal scratch']
  #allocation2 [shape = 'f32[2,80,128]{2,1,0:T(8,128)}', space=vmem, size = 0x14000, scoped, tag = 'scratch operand']
  %s0 = inlined_call_operand.hbm [shape: f32[2,64,128], index: 0, kind: input, shape index: {}]
  %s1 = inlined_call_operand.hbm [shape: bf16[3,3,128,128], index: 1, kind: input, shape index: {}]
  %s2 = inlined_call_operand.hbm [shape: f32[3,3,128], index: 2, kind: input, shape index: {}]
  %s3 = inlined_call_operand.hbm [shape: f32[2,64,128], index: 3, kind: output, shape index: {}]
  %s4 = sld [smem:[#allocation0]]
  $region34: #{tpu_custom_call.1} parent=0
    _
  %s6 = ssub.s32 1, %s4
  %s7 = scalar_select 0, %s6, %s4
  $region1: #{tpu_custom_call.1} parent=0
    #allocation3 [shape = 'u8[65536]{0}', space=vmem, size = 0x10000, scoped, tag = 'input window, operand 0, single buffered']
    #allocation4 [shape = 's32[1]{0}', space=sflag, size = 0x4, scoped, tag = 'scoped memory for tpu_custom_call.1']
    #allocation5 [shape = 's32[1]{0}', space=sflag, size = 0x4, scoped, tag = 'scoped memory for tpu_custom_call.1']
    #allocation6 [shape = 'u8[294912]{0}', space=vmem, size = 0x48000, scoped, tag = 'input window, operand 1, single buffered']
    #allocation7 [shape = 's32[1]{0}', space=sflag, size = 0x4, scoped, tag = 'scoped memory for tpu_custom_call.1']
    #allocation8 [shape = 'u8[6144]{0}', space=vmem, size = 0x1800, scoped, tag = 'input window, operand 2, single buffered']
    #allocation9 [shape = 'u8[65536]{0}', space=vmem, size = 0x10000, scoped, tag = 'output window, operand 0, single buffered']
    %8 = vsyncpa [#allocation4], 0
    %9 = vsyncpa [#allocation7], 0
    %10 = vsyncpa [#allocation5], 0
    // Predicated region
    $region2: #{tpu_custom_call.1} parent=1 // pred_check
      _
    $region3: #{tpu_custom_call.1} parent=1 // pred_check_branch
      %12 = sbr.rel (0) target = $region5
    $region4: #{tpu_custom_call.1} parent=1 // pred_region
      %s14 = ssub.s32 2048, 2048
      %15 = vsyncadd [#allocation4], %s14
      %s16 = sshll.u32 [#allocation3], 4
      %s17 = int_to_ptr.vmem [resolvable:$true] %s16
      %22 = dma.hbm_to_vmem [thread:$0]  %s0, 2048, %s17, [#allocation4], 128, 128, 8
    $region5: #{tpu_custom_call.1} parent=1 // pred_fallthru
      _
    // Predicated region
    $region6: #{tpu_custom_call.1} parent=1 // pred_check
      _
    $region7: #{tpu_custom_call.1} parent=1 // pred_check_branch
      %24 = sbr.rel (0) target = $region9
    $region8: #{tpu_custom_call.1} parent=1 // pred_region
      %s26 = ssub.s32 9216, 9216
      %27 = vsyncadd [#allocation7], %s26
      %s28 = sshll.u32 [#allocation6], 4
      %s29 = int_to_ptr.vmem [resolvable:$true] %s28
      %34 = dma.hbm_to_vmem [thread:$0]  %s1, 9216, %s29, [#allocation7], 64, 64, 4
    $region9: #{tpu_custom_call.1} parent=1 // pred_fallthru
      _
    // Predicated region
    $region10: #{tpu_custom_call.1} parent=1 // pred_check
      _
    $region11: #{tpu_custom_call.1} parent=1 // pred_check_branch
      %36 = sbr.rel (0) target = $region13
    $region12: #{tpu_custom_call.1} parent=1 // pred_region
      %s38 = ssub.s32 192, 192
      %39 = vsyncadd [#allocation7], %s38
      %s40 = sshll.u32 [#allocation8], 4
      %s41 = int_to_ptr.vmem [resolvable:$true] %s40
      %46 = dma.hbm_to_vmem [thread:$0]  %s2, 192, %s41, [#allocation7], 64, 64, 4
    $region13: #{tpu_custom_call.1} parent=1 // pred_fallthru
      _
    // Predicated region
    $region14: #{tpu_custom_call.1} parent=1 // pred_check
      _
    $region15: #{tpu_custom_call.1} parent=1 // pred_check_branch
      %48 = sbr.rel (0) target = $region17
    $region16: #{tpu_custom_call.1} parent=1 // pred_region
      %49 = dma.done [#allocation4], 2048
    $region17: #{tpu_custom_call.1} parent=1 // pred_fallthru
      _
    // Predicated region
    $region18: #{tpu_custom_call.1} parent=1 // pred_check
      _
    $region19: #{tpu_custom_call.1} parent=1 // pred_check_branch
      %51 = sbr.rel (0) target = $region21
    $region20: #{tpu_custom_call.1} parent=1 // pred_region
      %52 = dma.done [#allocation7], 9216
    $region21: #{tpu_custom_call.1} parent=1 // pred_fallthru
      _
    // Predicated region
    $region22: #{tpu_custom_call.1} parent=1 // pred_check
      _
    $region23: #{tpu_custom_call.1} parent=1 // pred_check_branch
      %54 = sbr.rel (0) target = $region25
    $region24: #{tpu_custom_call.1} parent=1 // pred_region
      %55 = dma.done [#allocation7], 192
    $region25: #{tpu_custom_call.1} parent=1 // pred_fallthru
      _
    %57 = vst [vmem:[#allocation2] sm:$0xff] 0.0
    %58 = vst [vmem:[#allocation2 + $0x50] sm:$0xff] 0.0
    %59 = vst [vmem:[#allocation2 + $0x48] sm:$0xff] 0.0
    %60 = vst [vmem:[#allocation2 + $0x98] sm:$0xff] 0.0
    %v61 = vld [vmem:[#allocation3] sm:$0xff]
    %v62 = vld [vmem:[#allocation3 + $0x8] sm:$0xff]
    %v63 = vld [vmem:[#allocation3 + $0x10] sm:$0xff]
    %v64 = vld [vmem:[#allocation3 + $0x18] sm:$0xff]
    %v65 = vld [vmem:[#allocation3 + $0x20] sm:$0xff]
    %v66 = vld [vmem:[#allocation3 + $0x28] sm:$0xff]
    %v67 = vld [vmem:[#allocation3 + $0x30] sm:$0xff]
    %v68 = vld [vmem:[#allocation3 + $0x38] sm:$0xff]
    %v69 = vld [vmem:[#allocation3 + $0x40] sm:$0xff]
    %v70 = vld [vmem:[#allocation3 + $0x48] sm:$0xff]
    %v71 = vld [vmem:[#allocation3 + $0x50] sm:$0xff]
    %v72 = vld [vmem:[#allocation3 + $0x58] sm:$0xff]
    %v73 = vld [vmem:[#allocation3 + $0x60] sm:$0xff]
    %v74 = vld [vmem:[#allocation3 + $0x68] sm:$0xff]
    %v75 = vld [vmem:[#allocation3 + $0x70] sm:$0xff]
    %v76 = vld [vmem:[#allocation3 + $0x78] sm:$0xff]
    %77 = vst [vmem:[#allocation2 + $0x8] sm:$0xff] %v61
    %78 = vst [vmem:[#allocation2 + $0x10] sm:$0xff] %v62
    %79 = vst [vmem:[#allocation2 + $0x18] sm:$0xff] %v63
    %80 = vst [vmem:[#allocation2 + $0x20] sm:$0xff] %v64
    %81 = vst [vmem:[#allocation2 + $0x28] sm:$0xff] %v65
    %82 = vst [vmem:[#allocation2 + $0x30] sm:$0xff] %v66
    %83 = vst [vmem:[#allocation2 + $0x38] sm:$0xff] %v67
    %84 = vst [vmem:[#allocation2 + $0x40] sm:$0xff] %v68
    %85 = vst [vmem:[#allocation2 + $0x58] sm:$0xff] %v69
    %86 = vst [vmem:[#allocation2 + $0x60] sm:$0xff] %v70
    %87 = vst [vmem:[#allocation2 + $0x68] sm:$0xff] %v71
    %88 = vst [vmem:[#allocation2 + $0x70] sm:$0xff] %v72
    %89 = vst [vmem:[#allocation2 + $0x78] sm:$0xff] %v73
    %90 = vst [vmem:[#allocation2 + $0x80] sm:$0xff] %v74
    %91 = vst [vmem:[#allocation2 + $0x88] sm:$0xff] %v75
    %92 = vst [vmem:[#allocation2 + $0x90] sm:$0xff] %v76
    %v93 = vld [vmem:[#allocation8] sm:$0x7]
    %v94 = vld [vmem:[#allocation2 + $0x8] sm:$0xff]
    %v95 = vld [vmem:[#allocation2 + $0x10] sm:$0xff]
    %v96 = vld [vmem:[#allocation2 + $0x18] sm:$0xff]
    %v97 = vld [vmem:[#allocation2 + $0x20] sm:$0xff]
    %v98 = vld [vmem:[#allocation2 + $0x28] sm:$0xff]
    %v99 = vld [vmem:[#allocation2 + $0x30] sm:$0xff]
    %v100 = vld [vmem:[#allocation2 + $0x38] sm:$0xff]
    %v101 = vld [vmem:[#allocation2 + $0x40] sm:$0xff]
    %v102 = vld [vmem:[#allocation2 + $0x58] sm:$0xff]
    %v103 = vld [vmem:[#allocation2 + $0x60] sm:$0xff]
    %v104 = vld [vmem:[#allocation2 + $0x68] sm:$0xff]
    %v105 = vld [vmem:[#allocation2 + $0x70] sm:$0xff]
    %v106 = vld [vmem:[#allocation2 + $0x78] sm:$0xff]
    %v107 = vld [vmem:[#allocation2 + $0x80] sm:$0xff]
    %v108 = vld [vmem:[#allocation2 + $0x88] sm:$0xff]
    %v109 = vld [vmem:[#allocation2 + $0x90] sm:$0xff]
    %v110 = vld [vmem:[#allocation2 + $0x7] sm:$0xff]
    %v111 = vld [vmem:[#allocation2 + $0xf] sm:$0xff]
    %v112 = vld [vmem:[#allocation2 + $0x17] sm:$0xff]
    %v113 = vld [vmem:[#allocation2 + $0x1f] sm:$0xff]
    %v114 = vld [vmem:[#allocation2 + $0x27] sm:$0xff]
    %v115 = vld [vmem:[#allocation2 + $0x2f] sm:$0xff]
    %v116 = vld [vmem:[#allocation2 + $0x37] sm:$0xff]
    %v117 = vld [vmem:[#allocation2 + $0x3f] sm:$0xff]
    %v118 = vld [vmem:[#allocation2 + $0x57] sm:$0xff]
    %v119 = vld [vmem:[#allocation2 + $0x5f] sm:$0xff]
    %v120 = vld [vmem:[#allocation2 + $0x67] sm:$0xff]
    %v121 = vld [vmem:[#allocation2 + $0x6f] sm:$0xff]
    %v122 = vld [vmem:[#allocation2 + $0x77] sm:$0xff]
    %v123 = vld [vmem:[#allocation2 + $0x7f] sm:$0xff]
    %v124 = vld [vmem:[#allocation2 + $0x87] sm:$0xff]
    %v125 = vld [vmem:[#allocation2 + $0x8f] sm:$0xff]
    %v126 = vld [vmem:[#allocation2 + $0x9] sm:$0xff]
    %v127 = vld [vmem:[#allocation2 + $0x11] sm:$0xff]
    %v128 = vld [vmem:[#allocation2 + $0x19] sm:$0xff]
    %v129 = vld [vmem:[#allocation2 + $0x21] sm:$0xff]
    %v130 = vld [vmem:[#allocation2 + $0x29] sm:$0xff]
    %v131 = vld [vmem:[#allocation2 + $0x31] sm:$0xff]
    %v132 = vld [vmem:[#allocation2 + $0x39] sm:$0xff]
    %v133 = vld [vmem:[#allocation2 + $0x41] sm:$0xff]
    %v134 = vld [vmem:[#allocation2 + $0x59] sm:$0xff]
    %v135 = vld [vmem:[#allocation2 + $0x61] sm:$0xff]
    %v136 = vld [vmem:[#allocation2 + $0x69] sm:$0xff]
    %v137 = vld [vmem:[#allocation2 + $0x71] sm:$0xff]
    %v138 = vld [vmem:[#allocation2 + $0x79] sm:$0xff]
    %v139 = vld [vmem:[#allocation2 + $0x81] sm:$0xff]
    %v140 = vld [vmem:[#allocation2 + $0x89] sm:$0xff]
    %v141 = vld [vmem:[#allocation2 + $0x91] sm:$0xff]
    %v142 = vpack.c.bf16 %v95, %v94
    %v143 = vpack.c.bf16 %v97, %v96
    %v144 = vpack.c.bf16 %v99, %v98
    %v145 = vpack.c.bf16 %v101, %v100
    %v146 = vpack.c.bf16 %v103, %v102
    %v147 = vpack.c.bf16 %v105, %v104
    %v148 = vpack.c.bf16 %v107, %v106
    %v149 = vpack.c.bf16 %v109, %v108
    %s150 = scalar_lea.vmem [#allocation6], 64
    %v151 = vld [vmem:[%s150] sm:$0xf]
    %v152 = vld [vmem:[%s150 + $0x4] sm:$0xf]
    %v153 = vld [vmem:[%s150 + $0x8] sm:$0xf]
    %v154 = vld [vmem:[%s150 + $0xc] sm:$0xf]
    %v155 = vld [vmem:[%s150 + $0x10] sm:$0xf]
    %v156 = vld [vmem:[%s150 + $0x14] sm:$0xf]
    %v157 = vld [vmem:[%s150 + $0x18] sm:$0xf]
    %v158 = vld [vmem:[%s150 + $0x1c] sm:$0xf]
    %v159 = vld [vmem:[%s150 + $0x20] sm:$0xf]
    %v160 = vld [vmem:[%s150 + $0x24] sm:$0xf]
    %v161 = vld [vmem:[%s150 + $0x28] sm:$0xf]
    %v162 = vld [vmem:[%s150 + $0x2c] sm:$0xf]
    %v163 = vld [vmem:[%s150 + $0x30] sm:$0xf]
    %v164 = vld [vmem:[%s150 + $0x34] sm:$0xf]
    %v165 = vld [vmem:[%s150 + $0x38] sm:$0xf]
    %v166 = vld [vmem:[%s150 + $0x3c] sm:$0xf]
    %v167 = vpack.c.bf16 %v111, %v110
    %v168 = vpack.c.bf16 %v113, %v112
    %v169 = vpack.c.bf16 %v115, %v114
    %v170 = vpack.c.bf16 %v117, %v116
    %v171 = vpack.c.bf16 %v119, %v118
    %v172 = vpack.c.bf16 %v121, %v120
    %v173 = vpack.c.bf16 %v123, %v122
    %v174 = vpack.c.bf16 %v125, %v124
    %v175 = vld [vmem:[#allocation6] sm:$0xf]
    %v176 = vld [vmem:[#allocation6 + $0x4] sm:$0xf]
    %v177 = vld [vmem:[#allocation6 + $0x8] sm:$0xf]
    %v178 = vld [vmem:[#allocation6 + $0xc] sm:$0xf]
    %v179 = vld [vmem:[#allocation6 + $0x10] sm:$0xf]
    %v180 = vld [vmem:[#allocation6 + $0x14] sm:$0xf]
    %v181 = vld [vmem:[#allocation6 + $0x18] sm:$0xf]
    %v182 = vld [vmem:[#allocation6 + $0x1c] sm:$0xf]
    %v183 = vld [vmem:[#allocation6 + $0x20] sm:$0xf]
    %v184 = vld [vmem:[#allocation6 + $0x24] sm:$0xf]
    %v185 = vld [vmem:[#allocation6 + $0x28] sm:$0xf]
    %v186 = vld [vmem:[#allocation6 + $0x2c] sm:$0xf]
    %v187 = vld [vmem:[#allocation6 + $0x30] sm:$0xf]
    %v188 = vld [vmem:[#allocation6 + $0x34] sm:$0xf]
    %v189 = vld [vmem:[#allocation6 + $0x38] sm:$0xf]
    %v190 = vld [vmem:[#allocation6 + $0x3c] sm:$0xf]
    %v207 = vunpack.c.l.b16 %v175
    %v208 = vunpack.c.l.b16 %v176
    %v209 = vunpack.c.l.b16 %v177
    %v210 = vunpack.c.l.b16 %v178
    %v211 = vunpack.c.l.b16 %v179
    %v212 = vunpack.c.l.b16 %v180
    %v213 = vunpack.c.l.b16 %v181
    %v214 = vunpack.c.l.b16 %v182
    %v215 = vunpack.c.l.b16 %v183
    %v216 = vunpack.c.l.b16 %v184
    %v217 = vunpack.c.l.b16 %v185
    %v218 = vunpack.c.l.b16 %v186
    %v219 = vunpack.c.l.b16 %v187
    %v220 = vunpack.c.l.b16 %v188
    %v221 = vunpack.c.l.b16 %v189
    %v222 = vunpack.c.l.b16 %v190
    %v223 = vpack.c.b16 %v208, %v207
    %v224 = vpack.c.b16 %v210, %v209
    %v225 = vpack.c.b16 %v212, %v211
    %v226 = vpack.c.b16 %v214, %v213
    %v227 = vpack.c.b16 %v216, %v215
    %v228 = vpack.c.b16 %v218, %v217
    %v229 = vpack.c.b16 %v220, %v219
    %v230 = vpack.c.b16 %v222, %v221
    %239 = vmatprep.subr.bf16.mxu0 0
    %240 = vmatpush1.bf16.msra.mxu0 %v223
    %241 = vmatprep.subr.bf16.mxu0 0
    %242 = vmatpush1.bf16.msra.mxu0 %v224
    %243 = vmatprep.subr.bf16.mxu0 0
    %244 = vmatpush1.bf16.msra.mxu0 %v225
    %245 = vmatprep.subr.bf16.mxu0 0
    %246 = vmatpush1.bf16.msra.mxu0 %v226
    %247 = vmatprep.subr.bf16.mxu0 0
    %248 = vmatpush1.bf16.msra.mxu0 %v227
    %249 = vmatprep.subr.bf16.mxu0 0
    %250 = vmatpush1.bf16.msra.mxu0 %v228
    %251 = vmatprep.subr.bf16.mxu0 0
    %252 = vmatpush1.bf16.msra.mxu0 %v229
    %253 = vmatprep.subr.bf16.mxu0 0
    %254 = vmatpush1.bf16.msra.mxu0 %v230
    %255 = vmatprep.subr.bf16.mxu0 0
    %256 = vmatpush1.bf16.msra.mxu0 0
    %257 = vmatprep.subr.bf16.mxu0 0
    %258 = vmatpush1.bf16.msra.mxu0 0
    %259 = vmatprep.subr.bf16.mxu0 0
    %260 = vmatpush1.bf16.msra.mxu0 0
    %261 = vmatprep.subr.bf16.mxu0 0
    %262 = vmatpush1.bf16.msra.mxu0 0
    %263 = vmatprep.subr.bf16.mxu0 0
    %264 = vmatpush1.bf16.msra.mxu0 0
    %265 = vmatprep.subr.bf16.mxu0 0
    %266 = vmatpush1.bf16.msra.mxu0 0
    %267 = vmatprep.subr.bf16.mxu0 0
    %268 = vmatpush1.bf16.msra.mxu0 0
    %269 = vmatprep.subr.bf16.mxu0 0
    %270 = vmatpush1.bf16.msra.mxu0 0
    %271 = vmatprep.mubr.bf16.mxu0 0
    %272 = vmatmul.mubr.bf16.gmra.mrb[0].mxu0 %v167
    %v273 = vpop.f32.mrb[0].mxu0
    %v274 = vadd.f32 0.0, %v273
    %v275 = vpop.f32.mrb[0].mxu0
    %v276 = vpop.f32.mrb[0].mxu0
    %v277 = vadd.f32 0.0, %v276
    %v278 = vpop.f32.mrb[0].mxu0
    %279 = vmatprep.mubr.bf16.mxu0 0
    %280 = vmatmul.mubr.bf16.gmra.mrb[0].mxu0 %v168
    %v281 = vpop.f32.mrb[0].mxu0
    %v282 = vadd.f32 0.0, %v281
    %v283 = vpop.f32.mrb[0].mxu0
    %v284 = vpop.f32.mrb[0].mxu0
    %v285 = vadd.f32 0.0, %v284
    %v286 = vpop.f32.mrb[0].mxu0
    %287 = vmatprep.mubr.bf16.mxu0 0
    %288 = vmatmul.mubr.bf16.gmra.mrb[0].mxu0 %v169
    %v289 = vpop.f32.mrb[0].mxu0
    %v290 = vadd.f32 0.0, %v289
    %v291 = vpop.f32.mrb[0].mxu0
    %v292 = vpop.f32.mrb[0].mxu0
    %v293 = vadd.f32 0.0, %v292
    %v294 = vpop.f32.mrb[0].mxu0
    %295 = vmatprep.mubr.bf16.mxu0 0
    %296 = vmatmul.mubr.bf16.gmra.mrb[0].mxu0 %v170
    %v297 = vpop.f32.mrb[0].mxu0
    %v298 = vadd.f32 0.0, %v297
    %v299 = vpop.f32.mrb[0].mxu0
    %v300 = vpop.f32.mrb[0].mxu0
    %v301 = vadd.f32 0.0, %v300
    %v302 = vpop.f32.mrb[0].mxu0
    %303 = vmatprep.mubr.bf16.mxu0 0
    %304 = vmatmul.mubr.bf16.gmra.mrb[0].mxu0 %v171
    %v305 = vpop.f32.mrb[0].mxu0
    %v306 = vadd.f32 0.0, %v305
    %v307 = vpop.f32.mrb[0].mxu0
    %v308 = vpop.f32.mrb[0].mxu0
    %v309 = vadd.f32 0.0, %v308
    %v310 = vpop.f32.mrb[0].mxu0
    %311 = vmatprep.mubr.bf16.mxu0 0
    %312 = vmatmul.mubr.bf16.gmra.mrb[0].mxu0 %v172
    %v313 = vpop.f32.mrb[0].mxu0
    %v314 = vadd.f32 0.0, %v313
    %v315 = vpop.f32.mrb[0].mxu0
    %v316 = vpop.f32.mrb[0].mxu0
    %v317 = vadd.f32 0.0, %v316
    %v318 = vpop.f32.mrb[0].mxu0
    %319 = vmatprep.mubr.bf16.mxu0 0
    %320 = vmatmul.mubr.bf16.gmra.mrb[0].mxu0 %v173
    %v321 = vpop.f32.mrb[0].mxu0
    %v322 = vadd.f32 0.0, %v321
    %v323 = vpop.f32.mrb[0].mxu0
    %v324 = vpop.f32.mrb[0].mxu0
    %v325 = vadd.f32 0.0, %v324
    %v326 = vpop.f32.mrb[0].mxu0
    %327 = vmatprep.mubr.bf16.mxu0 0
    %328 = vmatmul.mubr.bf16.gmra.mrb[0].mxu0 %v174
    %v329 = vpop.f32.mrb[0].mxu0
    %v330 = vadd.f32 0.0, %v329
    %v331 = vpop.f32.mrb[0].mxu0
    %v332 = vpop.f32.mrb[0].mxu0
    %v333 = vadd.f32 0.0, %v332
    %v334 = vpop.f32.mrb[0].mxu0
    %335 = vdwg.mxu0
    %v352 = vunpack.c.l.b16 %v151
    %v353 = vunpack.c.l.b16 %v152
    %v354 = vunpack.c.l.b16 %v153
    %v355 = vunpack.c.l.b16 %v154
    %v356 = vunpack.c.l.b16 %v155
    %v357 = vunpack.c.l.b16 %v156
    %v358 = vunpack.c.l.b16 %v157
    %v359 = vunpack.c.l.b16 %v158
    %v360 = vunpack.c.l.b16 %v159
    %v361 = vunpack.c.l.b16 %v160
    %v362 = vunpack.c.l.b16 %v161
    %v363 = vunpack.c.l.b16 %v162
    %v364 = vunpack.c.l.b16 %v163
    %v365 = vunpack.c.l.b16 %v164
    %v366 = vunpack.c.l.b16 %v165
    %v367 = vunpack.c.l.b16 %v166
    %v368 = vpack.c.b16 %v353, %v352
    %v369 = vpack.c.b16 %v355, %v354
    %v370 = vpack.c.b16 %v357, %v356
    %v371 = vpack.c.b16 %v359, %v358
    %v372 = vpack.c.b16 %v361, %v360
    %v373 = vpack.c.b16 %v363, %v362
    %v374 = vpack.c.b16 %v365, %v364
    %v375 = vpack.c.b16 %v367, %v366
    %384 = vmatprep.subr.bf16.mxu0 0
    %385 = vmatpush1.bf16.msra.mxu0 %v368
    %386 = vmatprep.subr.bf16.mxu0 0
    %387 = vmatpush1.bf16.msra.mxu0 %v369
    %388 = vmatprep.subr.bf16.mxu0 0
    %389 = vmatpush1.bf16.msra.mxu0 %v370
    %390 = vmatprep.subr.bf16.mxu0 0
    %391 = vmatpush1.bf16.msra.mxu0 %v371
    %392 = vmatprep.subr.bf16.mxu0 0
    %393 = vmatpush1.bf16.msra.mxu0 %v372
    %394 = vmatprep.subr.bf16.mxu0 0
    %395 = vmatpush1.bf16.msra.mxu0 %v373
    %396 = vmatprep.subr.bf16.mxu0 0
    %397 = vmatpush1.bf16.msra.mxu0 %v374
    %398 = vmatprep.subr.bf16.mxu0 0
    %399 = vmatpush1.bf16.msra.mxu0 %v375
    %400 = vmatprep.subr.bf16.mxu0 0
    %401 = vmatpush1.bf16.msra.mxu0 0
    %402 = vmatprep.subr.bf16.mxu0 0
    %403 = vmatpush1.bf16.msra.mxu0 0
    %404 = vmatprep.subr.bf16.mxu0 0
    %405 = vmatpush1.bf16.msra.mxu0 0
    %406 = vmatprep.subr.bf16.mxu0 0
    %407 = vmatpush1.bf16.msra.mxu0 0
    %408 = vmatprep.subr.bf16.mxu0 0
    %409 = vmatpush1.bf16.msra.mxu0 0
    %410 = vmatprep.subr.bf16.mxu0 0
    %411 = vmatpush1.bf16.msra.mxu0 0
    %412 = vmatprep.subr.bf16.mxu0 0
    %413 = vmatpush1.bf16.msra.mxu0 0
    %414 = vmatprep.subr.bf16.mxu0 0
    %415 = vmatpush1.bf16.msra.mxu0 0
    %416 = vmatprep.mubr.bf16.mxu0 0
    %417 = vmatmul.mubr.bf16.gmra.mrb[0].mxu0 %v142
    %v418 = vpop.f32.mrb[0].mxu0
    %v419 = vadd.f32 %v274, %v418
    %v420 = vpop.f32.mrb[0].mxu0
    %v421 = vpop.f32.mrb[0].mxu0
    %v422 = vadd.f32 %v277, %v421
    %v423 = vpop.f32.mrb[0].mxu0
    %424 = vmatprep.mubr.bf16.mxu0 0
    %425 = vmatmul.mubr.bf16.gmra.mrb[0].mxu0 %v143
    %v426 = vpop.f32.mrb[0].mxu0
    %v427 = vadd.f32 %v282, %v426
    %v428 = vpop.f32.mrb[0].mxu0
    %v429 = vpop.f32.mrb[0].mxu0
    %v430 = vadd.f32 %v285, %v429
    %v431 = vpop.f32.mrb[0].mxu0
    %432 = vmatprep.mubr.bf16.mxu0 0
    %433 = vmatmul.mubr.bf16.gmra.mrb[0].mxu0 %v144
    %v434 = vpop.f32.mrb[0].mxu0
    %v435 = vadd.f32 %v290, %v434
    %v436 = vpop.f32.mrb[0].mxu0
    %v437 = vpop.f32.mrb[0].mxu0
    %v438 = vadd.f32 %v293, %v437
    %v439 = vpop.f32.mrb[0].mxu0
    %440 = vmatprep.mubr.bf16.mxu0 0
    %441 = vmatmul.mubr.bf16.gmra.mrb[0].mxu0 %v145
    %v442 = vpop.f32.mrb[0].mxu0
    %v443 = vadd.f32 %v298, %v442
    %v444 = vpop.f32.mrb[0].mxu0
    %v445 = vpop.f32.mrb[0].mxu0
    %v446 = vadd.f32 %v301, %v445
    %v447 = vpop.f32.mrb[0].mxu0
    %448 = vmatprep.mubr.bf16.mxu0 0
    %449 = vmatmul.mubr.bf16.gmra.mrb[0].mxu0 %v146
    %v450 = vpop.f32.mrb[0].mxu0
    %v451 = vadd.f32 %v306, %v450
    %v452 = vpop.f32.mrb[0].mxu0
    %v453 = vpop.f32.mrb[0].mxu0
    %v454 = vadd.f32 %v309, %v453
    %v455 = vpop.f32.mrb[0].mxu0
    %456 = vmatprep.mubr.bf16.mxu0 0
    %457 = vmatmul.mubr.bf16.gmra.mrb[0].mxu0 %v147
    %v458 = vpop.f32.mrb[0].mxu0
    %v459 = vadd.f32 %v314, %v458
    %v460 = vpop.f32.mrb[0].mxu0
    %v461 = vpop.f32.mrb[0].mxu0
    %v462 = vadd.f32 %v317, %v461
    %v463 = vpop.f32.mrb[0].mxu0
    %464 = vmatprep.mubr.bf16.mxu0 0
    %465 = vmatmul.mubr.bf16.gmra.mrb[0].mxu0 %v148
    %v466 = vpop.f32.mrb[0].mxu0
    %v467 = vadd.f32 %v322, %v466
    %v468 = vpop.f32.mrb[0].mxu0
    %v469 = vpop.f32.mrb[0].mxu0
    %v470 = vadd.f32 %v325, %v469
    %v471 = vpop.f32.mrb[0].mxu0
    %472 = vmatprep.mubr.bf16.mxu0 0
    %473 = vmatmul.mubr.bf16.gmra.mrb[0].mxu0 %v149
    %v474 = vpop.f32.mrb[0].mxu0
    %v475 = vadd.f32 %v330, %v474
    %v476 = vpop.f32.mrb[0].mxu0
    %v477 = vpop.f32.mrb[0].mxu0
    %v478 = vadd.f32 %v333, %v477
    %v479 = vpop.f32.mrb[0].mxu0
    %480 = vdwg.mxu0
    %v481 = vpack.c.bf16 %v127, %v126
    %v482 = vpack.c.bf16 %v129, %v128
    %v483 = vpack.c.bf16 %v131, %v130
    %v484 = vpack.c.bf16 %v133, %v132
    %v485 = vpack.c.bf16 %v135, %v134
    %v486 = vpack.c.bf16 %v137, %v136
    %v487 = vpack.c.bf16 %v139, %v138
    %v488 = vpack.c.bf16 %v141, %v140
    %s489 = scalar_lea.vmem [#allocation6], 128
    %v490 = vld [vmem:[%s489] sm:$0xf]
    %v491 = vld [vmem:[%s489 + $0x4] sm:$0xf]
    %v492 = vld [vmem:[%s489 + $0x8] sm:$0xf]
    %v493 = vld [vmem:[%s489 + $0xc] sm:$0xf]
    %v494 = vld [vmem:[%s489 + $0x10] sm:$0xf]
    %v495 = vld [vmem:[%s489 + $0x14] sm:$0xf]
    %v496 = vld [vmem:[%s489 + $0x18] sm:$0xf]
    %v497 = vld [vmem:[%s489 + $0x1c] sm:$0xf]
    %v498 = vld [vmem:[%s489 + $0x20] sm:$0xf]
    %v499 = vld [vmem:[%s489 + $0x24] sm:$0xf]
    %v500 = vld [vmem:[%s489 + $0x28] sm:$0xf]
    %v501 = vld [vmem:[%s489 + $0x2c] sm:$0xf]
    %v502 = vld [vmem:[%s489 + $0x30] sm:$0xf]
    %v503 = vld [vmem:[%s489 + $0x34] sm:$0xf]
    %v504 = vld [vmem:[%s489 + $0x38] sm:$0xf]
    %v505 = vld [vmem:[%s489 + $0x3c] sm:$0xf]
    %v522 = vunpack.c.l.b16 %v490
    %v523 = vunpack.c.l.b16 %v491
    %v524 = vunpack.c.l.b16 %v492
    %v525 = vunpack.c.l.b16 %v493
    %v526 = vunpack.c.l.b16 %v494
    %v527 = vunpack.c.l.b16 %v495
    %v528 = vunpack.c.l.b16 %v496
    %v529 = vunpack.c.l.b16 %v497
    %v530 = vunpack.c.l.b16 %v498
    %v531 = vunpack.c.l.b16 %v499
    %v532 = vunpack.c.l.b16 %v500
    %v533 = vunpack.c.l.b16 %v501
    %v534 = vunpack.c.l.b16 %v502
    %v535 = vunpack.c.l.b16 %v503
    %v536 = vunpack.c.l.b16 %v504
    %v537 = vunpack.c.l.b16 %v505
    %v538 = vpack.c.b16 %v523, %v522
    %v539 = vpack.c.b16 %v525, %v524
    %v540 = vpack.c.b16 %v527, %v526
    %v541 = vpack.c.b16 %v529, %v528
    %v542 = vpack.c.b16 %v531, %v530
    %v543 = vpack.c.b16 %v533, %v532
    %v544 = vpack.c.b16 %v535, %v534
    %v545 = vpack.c.b16 %v537, %v536
    %554 = vmatprep.subr.bf16.mxu0 0
    %555 = vmatpush1.bf16.msra.mxu0 %v538
    %556 = vmatprep.subr.bf16.mxu0 0
    %557 = vmatpush1.bf16.msra.mxu0 %v539
    %558 = vmatprep.subr.bf16.mxu0 0
    %559 = vmatpush1.bf16.msra.mxu0 %v540
    %560 = vmatprep.subr.bf16.mxu0 0
    %561 = vmatpush1.bf16.msra.mxu0 %v541
    %562 = vmatprep.subr.bf16.mxu0 0
    %563 = vmatpush1.bf16.msra.mxu0 %v542
    %564 = vmatprep.subr.bf16.mxu0 0
    %565 = vmatpush1.bf16.msra.mxu0 %v543
    %566 = vmatprep.subr.bf16.mxu0 0
    %567 = vmatpush1.bf16.msra.mxu0 %v544
    %568 = vmatprep.subr.bf16.mxu0 0
    %569 = vmatpush1.bf16.msra.mxu0 %v545
    %570 = vmatprep.subr.bf16.mxu0 0
    %571 = vmatpush1.bf16.msra.mxu0 0
    %572 = vmatprep.subr.bf16.mxu0 0
    %573 = vmatpush1.bf16.msra.mxu0 0
    %574 = vmatprep.subr.bf16.mxu0 0
    %575 = vmatpush1.bf16.msra.mxu0 0
    %576 = vmatprep.subr.bf16.mxu0 0
    %577 = vmatpush1.bf16.msra.mxu0 0
    %578 = vmatprep.subr.bf16.mxu0 0
    %579 = vmatpush1.bf16.msra.mxu0 0
    %580 = vmatprep.subr.bf16.mxu0 0
    %581 = vmatpush1.bf16.msra.mxu0 0
    %582 = vmatprep.subr.bf16.mxu0 0
    %583 = vmatpush1.bf16.msra.mxu0 0
    %584 = vmatprep.subr.bf16.mxu0 0
    %585 = vmatpush1.bf16.msra.mxu0 0
    %586 = vmatprep.mubr.bf16.mxu0 0
    %587 = vmatmul.mubr.bf16.gmra.mrb[0].mxu0 %v481
    %v588 = vpop.f32.mrb[0].mxu0
    %v589 = vadd.f32 0.0, %v588
    %v590 = vpop.f32.mrb[0].mxu0
    %v591 = vpop.f32.mrb[0].mxu0
    %v592 = vadd.f32 0.0, %v591
    %v593 = vpop.f32.mrb[0].mxu0
    %594 = vmatprep.mubr.bf16.mxu0 0
    %595 = vmatmul.mubr.bf16.gmra.mrb[0].mxu0 %v482
    %v596 = vpop.f32.mrb[0].mxu0
    %v597 = vadd.f32 0.0, %v596
    %v598 = vpop.f32.mrb[0].mxu0
    %v599 = vpop.f32.mrb[0].mxu0
    %v600 = vadd.f32 0.0, %v599
    %v601 = vpop.f32.mrb[0].mxu0
    %602 = vmatprep.mubr.bf16.mxu0 0
    %603 = vmatmul.mubr.bf16.gmra.mrb[0].mxu0 %v483
    %v604 = vpop.f32.mrb[0].mxu0
    %v605 = vadd.f32 0.0, %v604
    %v606 = vpop.f32.mrb[0].mxu0
    %v607 = vpop.f32.mrb[0].mxu0
    %v608 = vadd.f32 0.0, %v607
    %v609 = vpop.f32.mrb[0].mxu0
    %610 = vmatprep.mubr.bf16.mxu0 0
    %611 = vmatmul.mubr.bf16.gmra.mrb[0].mxu0 %v484
    %v612 = vpop.f32.mrb[0].mxu0
    %v613 = vadd.f32 0.0, %v612
    %v614 = vpop.f32.mrb[0].mxu0
    %v615 = vpop.f32.mrb[0].mxu0
    %v616 = vadd.f32 0.0, %v615
    %v617 = vpop.f32.mrb[0].mxu0
    %618 = vmatprep.mubr.bf16.mxu0 0
    %619 = vmatmul.mubr.bf16.gmra.mrb[0].mxu0 %v485
    %v620 = vpop.f32.mrb[0].mxu0
    %v621 = vadd.f32 0.0, %v620
    %v622 = vpop.f32.mrb[0].mxu0
    %v623 = vpop.f32.mrb[0].mxu0
    %v624 = vadd.f32 0.0, %v623
    %v625 = vpop.f32.mrb[0].mxu0
    %626 = vmatprep.mubr.bf16.mxu0 0
    %627 = vmatmul.mubr.bf16.gmra.mrb[0].mxu0 %v486
    %v628 = vpop.f32.mrb[0].mxu0
    %v629 = vadd.f32 0.0, %v628
    %v630 = vpop.f32.mrb[0].mxu0
    %v631 = vpop.f32.mrb[0].mxu0
    %v632 = vadd.f32 0.0, %v631
    %v633 = vpop.f32.mrb[0].mxu0
    %634 = vmatprep.mubr.bf16.mxu0 0
    %635 = vmatmul.mubr.bf16.gmra.mrb[0].mxu0 %v487
    %v636 = vpop.f32.mrb[0].mxu0
    %v637 = vadd.f32 0.0, %v636
    %v638 = vpop.f32.mrb[0].mxu0
    %v639 = vpop.f32.mrb[0].mxu0
    %v640 = vadd.f32 0.0, %v639
    %v641 = vpop.f32.mrb[0].mxu0
    %642 = vmatprep.mubr.bf16.mxu0 0
    %643 = vmatmul.mubr.bf16.gmra.mrb[0].mxu0 %v488
    %v644 = vpop.f32.mrb[0].mxu0
    %v645 = vadd.f32 0.0, %v644
    %v646 = vpop.f32.mrb[0].mxu0
    %v647 = vpop.f32.mrb[0].mxu0
    %v648 = vadd.f32 0.0, %v647
    %v649 = vpop.f32.mrb[0].mxu0
    %650 = vdwg.mxu0
    %v651 = vadd.f32 %v419, %v589
    %v652 = vadd.f32 %v422, %v592
    %v653 = vadd.f32 %v427, %v597
    %v654 = vadd.f32 %v430, %v600
    %v655 = vadd.f32 %v435, %v605
    %v656 = vadd.f32 %v438, %v608
    %v657 = vadd.f32 %v443, %v613
    %v658 = vadd.f32 %v446, %v616
    %v659 = vadd.f32 %v451, %v621
    %v660 = vadd.f32 %v454, %v624
    %v661 = vadd.f32 %v459, %v629
    %v662 = vadd.f32 %v462, %v632
    %v663 = vadd.f32 %v467, %v637
    %v664 = vadd.f32 %v470, %v640
    %v665 = vadd.f32 %v475, %v645
    %v666 = vadd.f32 %v478, %v648
    %v667 = vlaneseq
    %v668 = vshrl.u32 %v667, 7
    %v669 = vsub.s32 0, %v668
    %v670 = vrot.slane %v93, %v669
    %v671 = vadd.f32 %v651, %v670
    %v672 = vadd.f32 %v652, %v670
    %v673 = vadd.f32 %v653, %v670
    %v674 = vadd.f32 %v654, %v670
    %v675 = vadd.f32 %v655, %v670
    %v676 = vadd.f32 %v656, %v670
    %v677 = vadd.f32 %v657, %v670
    %v678 = vadd.f32 %v658, %v670
    %v679 = vadd.f32 %v659, %v670
    %v680 = vadd.f32 %v660, %v670
    %v681 = vadd.f32 %v661, %v670
    %v682 = vadd.f32 %v662, %v670
    %v683 = vadd.f32 %v663, %v670
    %v684 = vadd.f32 %v664, %v670
    %v685 = vadd.f32 %v665, %v670
    %v686 = vadd.f32 %v666, %v670
    %v687 = vadd.f32 %v671, %v94
    %v688 = vadd.f32 %v672, %v95
    %v689 = vadd.f32 %v673, %v96
    %v690 = vadd.f32 %v674, %v97
    %v691 = vadd.f32 %v675, %v98
    %v692 = vadd.f32 %v676, %v99
    %v693 = vadd.f32 %v677, %v100
    %v694 = vadd.f32 %v678, %v101
    %v695 = vadd.f32 %v679, %v102
    %v696 = vadd.f32 %v680, %v103
    %v697 = vadd.f32 %v681, %v104
    %v698 = vadd.f32 %v682, %v105
    %v699 = vadd.f32 %v683, %v106
    %v700 = vadd.f32 %v684, %v107
    %v701 = vadd.f32 %v685, %v108
    %v702 = vadd.f32 %v686, %v109
    %v703 = vmul.f32 %v687, 0.2
    %v704 = vmul.f32 %v688, 0.2
    %v705 = vmul.f32 %v689, 0.2
    %v706 = vmul.f32 %v690, 0.2
    %v707 = vmul.f32 %v691, 0.2
    %v708 = vmul.f32 %v692, 0.2
    %v709 = vmul.f32 %v693, 0.2
    %v710 = vmul.f32 %v694, 0.2
    %v711 = vmul.f32 %v695, 0.2
    %v712 = vmul.f32 %v696, 0.2
    %v713 = vmul.f32 %v697, 0.2
    %v714 = vmul.f32 %v698, 0.2
    %v715 = vmul.f32 %v699, 0.2
    %v716 = vmul.f32 %v700, 0.2
    %v717 = vmul.f32 %v701, 0.2
    %v718 = vmul.f32 %v702, 0.2
    %v719 = vmax.f32 %v687, %v703
    %v720 = vmax.f32 %v688, %v704
    %v721 = vmax.f32 %v689, %v705
    %v722 = vmax.f32 %v690, %v706
    %v723 = vmax.f32 %v691, %v707
    %v724 = vmax.f32 %v692, %v708
    %v725 = vmax.f32 %v693, %v709
    %v726 = vmax.f32 %v694, %v710
    %v727 = vmax.f32 %v695, %v711
    %v728 = vmax.f32 %v696, %v712
    %v729 = vmax.f32 %v697, %v713
    %v730 = vmax.f32 %v698, %v714
    %v731 = vmax.f32 %v699, %v715
    %v732 = vmax.f32 %v700, %v716
    %v733 = vmax.f32 %v701, %v717
    %v734 = vmax.f32 %v702, %v718
    %v735 = vadd.f32 %v719, %v720
    %v736 = vadd.f32 %v735, %v721
    %v737 = vadd.f32 %v736, %v722
    %v738 = vadd.f32 %v737, %v723
    %v739 = vadd.f32 %v738, %v724
    %v740 = vadd.f32 %v739, %v725
    %v741 = vadd.f32 %v740, %v726
    %v742 = vadd.f32 %v741, %v727
    %v743 = vadd.f32 %v742, %v728
    %v744 = vadd.f32 %v743, %v729
    %v745 = vadd.f32 %v744, %v730
    %v746 = vadd.f32 %v745, %v731
    %v747 = vadd.f32 %v746, %v732
    %v748 = vadd.f32 %v747, %v733
    %v749 = vadd.f32 %v748, %v734
    %v750 = vrot.slane %v749, 4
    %v751 = vadd.f32 %v749, %v750
    %v752 = vrot.slane %v751, 2
    %v753 = vadd.f32 %v751, %v752
    %v754 = vrot.slane %v753, 1
    %v755 = vadd.f32 %v753, %v754
    %v756 = vmul.f32 %v755, 0.0078125
    %v757 = vsub.f32 %v719, %v756
    %v758 = vsub.f32 %v720, %v756
    %v759 = vsub.f32 %v721, %v756
    %v760 = vsub.f32 %v722, %v756
    %v761 = vsub.f32 %v723, %v756
    %v762 = vsub.f32 %v724, %v756
    %v763 = vsub.f32 %v725, %v756
    %v764 = vsub.f32 %v726, %v756
    %v765 = vsub.f32 %v727, %v756
    %v766 = vsub.f32 %v728, %v756
    %v767 = vsub.f32 %v729, %v756
    %v768 = vsub.f32 %v730, %v756
    %v769 = vsub.f32 %v731, %v756
    %v770 = vsub.f32 %v732, %v756
    %v771 = vsub.f32 %v733, %v756
    %v772 = vsub.f32 %v734, %v756
    %v773 = vmul.f32 %v757, %v757
    %v774 = vmul.f32 %v758, %v758
    %v775 = vmul.f32 %v759, %v759
    %v776 = vmul.f32 %v760, %v760
    %v777 = vmul.f32 %v761, %v761
    %v778 = vmul.f32 %v762, %v762
    %v779 = vmul.f32 %v763, %v763
    %v780 = vmul.f32 %v764, %v764
    %v781 = vmul.f32 %v765, %v765
    %v782 = vmul.f32 %v766, %v766
    %v783 = vmul.f32 %v767, %v767
    %v784 = vmul.f32 %v768, %v768
    %v785 = vmul.f32 %v769, %v769
    %v786 = vmul.f32 %v770, %v770
    %v787 = vmul.f32 %v771, %v771
    %v788 = vmul.f32 %v772, %v772
    %v789 = vadd.f32 %v773, %v774
    %v790 = vadd.f32 %v789, %v775
    %v791 = vadd.f32 %v790, %v776
    %v792 = vadd.f32 %v791, %v777
    %v793 = vadd.f32 %v792, %v778
    %v794 = vadd.f32 %v793, %v779
    %v795 = vadd.f32 %v794, %v780
    %v796 = vadd.f32 %v795, %v781
    %v797 = vadd.f32 %v796, %v782
    %v798 = vadd.f32 %v797, %v783
    %v799 = vadd.f32 %v798, %v784
    %v800 = vadd.f32 %v799, %v785
    %v801 = vadd.f32 %v800, %v786
    %v802 = vadd.f32 %v801, %v787
    %v803 = vadd.f32 %v802, %v788
    %v804 = vrot.slane %v803, 4
    %v805 = vadd.f32 %v803, %v804
    %v806 = vrot.slane %v805, 2
    %v807 = vadd.f32 %v805, %v806
    %v808 = vrot.slane %v807, 1
    %v809 = vadd.f32 %v807, %v808
    %v810 = vmul.f32 %v809, 0.0078125
    %v811 = vadd.f32 %v810, 1e-05
    %v812 = vrsqrt.pop %v811
    %v813 = vmul.f32 %v812, %v93
    %v814 = vlaneseq
    %v815 = vshrl.u32 %v814, 7
    %v816 = vsub.s32 1, %v815
    %v817 = vrot.slane %v813, %v816
    %v818 = vmul.f32 %v757, %v817
    %v819 = vmul.f32 %v758, %v817
    %v820 = vmul.f32 %v759, %v817
    %v821 = vmul.f32 %v760, %v817
    %v822 = vmul.f32 %v761, %v817
    %v823 = vmul.f32 %v762, %v817
    %v824 = vmul.f32 %v763, %v817
    %v825 = vmul.f32 %v764, %v817
    %v826 = vmul.f32 %v765, %v817
    %v827 = vmul.f32 %v766, %v817
    %v828 = vmul.f32 %v767, %v817
    %v829 = vmul.f32 %v768, %v817
    %v830 = vmul.f32 %v769, %v817
    %v831 = vmul.f32 %v770, %v817
    %v832 = vmul.f32 %v771, %v817
    %v833 = vmul.f32 %v772, %v817
    %v834 = vlaneseq
    %v835 = vshrl.u32 %v834, 7
    %v836 = vsub.s32 2, %v835
    %v837 = vrot.slane %v93, %v836
    %v838 = vadd.f32 %v818, %v837
    %v839 = vadd.f32 %v819, %v837
    %v840 = vadd.f32 %v820, %v837
    %v841 = vadd.f32 %v821, %v837
    %v842 = vadd.f32 %v822, %v837
    %v843 = vadd.f32 %v823, %v837
    %v844 = vadd.f32 %v824, %v837
    %v845 = vadd.f32 %v825, %v837
    %v846 = vadd.f32 %v826, %v837
    %v847 = vadd.f32 %v827, %v837
    %v848 = vadd.f32 %v828, %v837
    %v849 = vadd.f32 %v829, %v837
    %v850 = vadd.f32 %v830, %v837
    %v851 = vadd.f32 %v831, %v837
    %v852 = vadd.f32 %v832, %v837
    %v853 = vadd.f32 %v833, %v837
    %854 = vst [vmem:[#allocation2 + $0x8] sm:$0xff] %v838
    %855 = vst [vmem:[#allocation2 + $0x10] sm:$0xff] %v839
    %856 = vst [vmem:[#allocation2 + $0x18] sm:$0xff] %v840
    %857 = vst [vmem:[#allocation2 + $0x20] sm:$0xff] %v841
    %858 = vst [vmem:[#allocation2 + $0x28] sm:$0xff] %v842
    %859 = vst [vmem:[#allocation2 + $0x30] sm:$0xff] %v843
    %860 = vst [vmem:[#allocation2 + $0x38] sm:$0xff] %v844
    %861 = vst [vmem:[#allocation2 + $0x40] sm:$0xff] %v845
    %862 = vst [vmem:[#allocation2 + $0x58] sm:$0xff] %v846
    %863 = vst [vmem:[#allocation2 + $0x60] sm:$0xff] %v847
    %864 = vst [vmem:[#allocation2 + $0x68] sm:$0xff] %v848
    %865 = vst [vmem:[#allocation2 + $0x70] sm:$0xff] %v849
    %866 = vst [vmem:[#allocation2 + $0x78] sm:$0xff] %v850
    %867 = vst [vmem:[#allocation2 + $0x80] sm:$0xff] %v851
    %868 = vst [vmem:[#allocation2 + $0x88] sm:$0xff] %v852
    %869 = vst [vmem:[#allocation2 + $0x90] sm:$0xff] %v853
    %s870 = scalar_lea.vmem [#allocation8], 4
    %v871 = vld [vmem:[%s870] sm:$0x7]
    %v872 = vld [vmem:[#allocation2 + $0x8] sm:$0xff]
    %v873 = vld [vmem:[#allocation2 + $0x10] sm:$0xff]
    %v874 = vld [vmem:[#allocation2 + $0x18] sm:$0xff]
    %v875 = vld [vmem:[#allocation2 + $0x20] sm:$0xff]
    %v876 = vld [vmem:[#allocation2 + $0x28] sm:$0xff]
    %v877 = vld [vmem:[#allocation2 + $0x30] sm:$0xff]
    %v878 = vld [vmem:[#allocation2 + $0x38] sm:$0xff]
    %v879 = vld [vmem:[#allocation2 + $0x40] sm:$0xff]
    %v880 = vld [vmem:[#allocation2 + $0x58] sm:$0xff]
    %v881 = vld [vmem:[#allocation2 + $0x60] sm:$0xff]
    %v882 = vld [vmem:[#allocation2 + $0x68] sm:$0xff]
    %v883 = vld [vmem:[#allocation2 + $0x70] sm:$0xff]
    %v884 = vld [vmem:[#allocation2 + $0x78] sm:$0xff]
    %v885 = vld [vmem:[#allocation2 + $0x80] sm:$0xff]
    %v886 = vld [vmem:[#allocation2 + $0x88] sm:$0xff]
    %v887 = vld [vmem:[#allocation2 + $0x90] sm:$0xff]
    %v888 = vld [vmem:[#allocation2 + $0x6] sm:$0xff]
    %v889 = vld [vmem:[#allocation2 + $0xe] sm:$0xff]
    %v890 = vld [vmem:[#allocation2 + $0x16] sm:$0xff]
    %v891 = vld [vmem:[#allocation2 + $0x1e] sm:$0xff]
    %v892 = vld [vmem:[#allocation2 + $0x26] sm:$0xff]
    %v893 = vld [vmem:[#allocation2 + $0x2e] sm:$0xff]
    %v894 = vld [vmem:[#allocation2 + $0x36] sm:$0xff]
    %v895 = vld [vmem:[#allocation2 + $0x3e] sm:$0xff]
    %v896 = vld [vmem:[#allocation2 + $0x56] sm:$0xff]
    %v897 = vld [vmem:[#allocation2 + $0x5e] sm:$0xff]
    %v898 = vld [vmem:[#allocation2 + $0x66] sm:$0xff]
    %v899 = vld [vmem:[#allocation2 + $0x6e] sm:$0xff]
    %v900 = vld [vmem:[#allocation2 + $0x76] sm:$0xff]
    %v901 = vld [vmem:[#allocation2 + $0x7e] sm:$0xff]
    %v902 = vld [vmem:[#allocation2 + $0x86] sm:$0xff]
    %v903 = vld [vmem:[#allocation2 + $0x8e] sm:$0xff]
    %v904 = vld [vmem:[#allocation2 + $0xa] sm:$0xff]
    %v905 = vld [vmem:[#allocation2 + $0x12] sm:$0xff]
    %v906 = vld [vmem:[#allocation2 + $0x1a] sm:$0xff]
    %v907 = vld [vmem:[#allocation2 + $0x22] sm:$0xff]
    %v908 = vld [vmem:[#allocation2 + $0x2a] sm:$0xff]
    %v909 = vld [vmem:[#allocation2 + $0x32] sm:$0xff]
    %v910 = vld [vmem:[#allocation2 + $0x3a] sm:$0xff]
    %v911 = vld [vmem:[#allocation2 + $0x42] sm:$0xff]
    %v912 = vld [vmem:[#allocation2 + $0x5a] sm:$0xff]
    %v913 = vld [vmem:[#allocation2 + $0x62] sm:$0xff]
    %v914 = vld [vmem:[#allocation2 + $0x6a] sm:$0xff]
    %v915 = vld [vmem:[#allocation2 + $0x72] sm:$0xff]
    %v916 = vld [vmem:[#allocation2 + $0x7a] sm:$0xff]
    %v917 = vld [vmem:[#allocation2 + $0x82] sm:$0xff]
    %v918 = vld [vmem:[#allocation2 + $0x8a] sm:$0xff]
    %v919 = vld [vmem:[#allocation2 + $0x92] sm:$0xff]
    %v920 = vpack.c.bf16 %v873, %v872
    %v921 = vpack.c.bf16 %v875, %v874
    %v922 = vpack.c.bf16 %v877, %v876
    %v923 = vpack.c.bf16 %v879, %v878
    %v924 = vpack.c.bf16 %v881, %v880
    %v925 = vpack.c.bf16 %v883, %v882
    %v926 = vpack.c.bf16 %v885, %v884
    %v927 = vpack.c.bf16 %v887, %v886
    %s928 = scalar_lea.vmem [#allocation6], 256
    %v929 = vld [vmem:[%s928] sm:$0xf]
    %v930 = vld [vmem:[%s928 + $0x4] sm:$0xf]
    %v931 = vld [vmem:[%s928 + $0x8] sm:$0xf]
    %v932 = vld [vmem:[%s928 + $0xc] sm:$0xf]
    %v933 = vld [vmem:[%s928 + $0x10] sm:$0xf]
    %v934 = vld [vmem:[%s928 + $0x14] sm:$0xf]
    %v935 = vld [vmem:[%s928 + $0x18] sm:$0xf]
    %v936 = vld [vmem:[%s928 + $0x1c] sm:$0xf]
    %v937 = vld [vmem:[%s928 + $0x20] sm:$0xf]
    %v938 = vld [vmem:[%s928 + $0x24] sm:$0xf]
    %v939 = vld [vmem:[%s928 + $0x28] sm:$0xf]
    %v940 = vld [vmem:[%s928 + $0x2c] sm:$0xf]
    %v941 = vld [vmem:[%s928 + $0x30] sm:$0xf]
    %v942 = vld [vmem:[%s928 + $0x34] sm:$0xf]
    %v943 = vld [vmem:[%s928 + $0x38] sm:$0xf]
    %v944 = vld [vmem:[%s928 + $0x3c] sm:$0xf]
    %v945 = vpack.c.bf16 %v889, %v888
    %v946 = vpack.c.bf16 %v891, %v890
    %v947 = vpack.c.bf16 %v893, %v892
    %v948 = vpack.c.bf16 %v895, %v894
    %v949 = vpack.c.bf16 %v897, %v896
    %v950 = vpack.c.bf16 %v899, %v898
    %v951 = vpack.c.bf16 %v901, %v900
    %v952 = vpack.c.bf16 %v903, %v902
    %s953 = scalar_lea.vmem [#allocation6], 192
    %v954 = vld [vmem:[%s953] sm:$0xf]
    %v955 = vld [vmem:[%s953 + $0x4] sm:$0xf]
    %v956 = vld [vmem:[%s953 + $0x8] sm:$0xf]
    %v957 = vld [vmem:[%s953 + $0xc] sm:$0xf]
    %v958 = vld [vmem:[%s953 + $0x10] sm:$0xf]
    %v959 = vld [vmem:[%s953 + $0x14] sm:$0xf]
    %v960 = vld [vmem:[%s953 + $0x18] sm:$0xf]
    %v961 = vld [vmem:[%s953 + $0x1c] sm:$0xf]
    %v962 = vld [vmem:[%s953 + $0x20] sm:$0xf]
    %v963 = vld [vmem:[%s953 + $0x24] sm:$0xf]
    %v964 = vld [vmem:[%s953 + $0x28] sm:$0xf]
    %v965 = vld [vmem:[%s953 + $0x2c] sm:$0xf]
    %v966 = vld [vmem:[%s953 + $0x30] sm:$0xf]
    %v967 = vld [vmem:[%s953 + $0x34] sm:$0xf]
    %v968 = vld [vmem:[%s953 + $0x38] sm:$0xf]
    %v969 = vld [vmem:[%s953 + $0x3c] sm:$0xf]
    %v986 = vunpack.c.l.b16 %v954
    %v987 = vunpack.c.l.b16 %v955
    %v988 = vunpack.c.l.b16 %v956
    %v989 = vunpack.c.l.b16 %v957
    %v990 = vunpack.c.l.b16 %v958
    %v991 = vunpack.c.l.b16 %v959
    %v992 = vunpack.c.l.b16 %v960
    %v993 = vunpack.c.l.b16 %v961
    %v994 = vunpack.c.l.b16 %v962
    %v995 = vunpack.c.l.b16 %v963
    %v996 = vunpack.c.l.b16 %v964
    %v997 = vunpack.c.l.b16 %v965
    %v998 = vunpack.c.l.b16 %v966
    %v999 = vunpack.c.l.b16 %v967
    %v1000 = vunpack.c.l.b16 %v968
    %v1001 = vunpack.c.l.b16 %v969
    %v1002 = vpack.c.b16 %v987, %v986
    %v1003 = vpack.c.b16 %v989, %v988
    %v1004 = vpack.c.b16 %v991, %v990
    %v1005 = vpack.c.b16 %v993, %v992
    %v1006 = vpack.c.b16 %v995, %v994
    %v1007 = vpack.c.b16 %v997, %v996
    %v1008 = vpack.c.b16 %v999, %v998
    %v1009 = vpack.c.b16 %v1001, %v1000
    %1018 = vmatprep.subr.bf16.mxu0 0
    %1019 = vmatpush1.bf16.msra.mxu0 %v1002
    %1020 = vmatprep.subr.bf16.mxu0 0
    %1021 = vmatpush1.bf16.msra.mxu0 %v1003
    %1022 = vmatprep.subr.bf16.mxu0 0
    %1023 = vmatpush1.bf16.msra.mxu0 %v1004
    %1024 = vmatprep.subr.bf16.mxu0 0
    %1025 = vmatpush1.bf16.msra.mxu0 %v1005
    %1026 = vmatprep.subr.bf16.mxu0 0
    %1027 = vmatpush1.bf16.msra.mxu0 %v1006
    %1028 = vmatprep.subr.bf16.mxu0 0
    %1029 = vmatpush1.bf16.msra.mxu0 %v1007
    %1030 = vmatprep.subr.bf16.mxu0 0
    %1031 = vmatpush1.bf16.msra.mxu0 %v1008
    %1032 = vmatprep.subr.bf16.mxu0 0
    %1033 = vmatpush1.bf16.msra.mxu0 %v1009
    %1034 = vmatprep.subr.bf16.mxu0 0
    %1035 = vmatpush1.bf16.msra.mxu0 0
    %1036 = vmatprep.subr.bf16.mxu0 0
    %1037 = vmatpush1.bf16.msra.mxu0 0
    %1038 = vmatprep.subr.bf16.mxu0 0
    %1039 = vmatpush1.bf16.msra.mxu0 0
    %1040 = vmatprep.subr.bf16.mxu0 0
    %1041 = vmatpush1.bf16.msra.mxu0 0
    %1042 = vmatprep.subr.bf16.mxu0 0
    %1043 = vmatpush1.bf16.msra.mxu0 0
    %1044 = vmatprep.subr.bf16.mxu0 0
    %1045 = vmatpush1.bf16.msra.mxu0 0
    %1046 = vmatprep.subr.bf16.mxu0 0
    %1047 = vmatpush1.bf16.msra.mxu0 0
    %1048 = vmatprep.subr.bf16.mxu0 0
    %1049 = vmatpush1.bf16.msra.mxu0 0
    %1050 = vmatprep.mubr.bf16.mxu0 0
    %1051 = vmatmul.mubr.bf16.gmra.mrb[0].mxu0 %v945
    %v1052 = vpop.f32.mrb[0].mxu0
    %v1053 = vadd.f32 0.0, %v1052
    %v1054 = vpop.f32.mrb[0].mxu0
    %v1055 = vpop.f32.mrb[0].mxu0
    %v1056 = vadd.f32 0.0, %v1055
    %v1057 = vpop.f32.mrb[0].mxu0
    %1058 = vmatprep.mubr.bf16.mxu0 0
    %1059 = vmatmul.mubr.bf16.gmra.mrb[0].mxu0 %v946
    %v1060 = vpop.f32.mrb[0].mxu0
    %v1061 = vadd.f32 0.0, %v1060
    %v1062 = vpop.f32.mrb[0].mxu0
    %v1063 = vpop.f32.mrb[0].mxu0
    %v1064 = vadd.f32 0.0, %v1063
    %v1065 = vpop.f32.mrb[0].mxu0
    %1066 = vmatprep.mubr.bf16.mxu0 0
    %1067 = vmatmul.mubr.bf16.gmra.mrb[0].mxu0 %v947
    %v1068 = vpop.f32.mrb[0].mxu0
    %v1069 = vadd.f32 0.0, %v1068
    %v1070 = vpop.f32.mrb[0].mxu0
    %v1071 = vpop.f32.mrb[0].mxu0
    %v1072 = vadd.f32 0.0, %v1071
    %v1073 = vpop.f32.mrb[0].mxu0
    %1074 = vmatprep.mubr.bf16.mxu0 0
    %1075 = vmatmul.mubr.bf16.gmra.mrb[0].mxu0 %v948
    %v1076 = vpop.f32.mrb[0].mxu0
    %v1077 = vadd.f32 0.0, %v1076
    %v1078 = vpop.f32.mrb[0].mxu0
    %v1079 = vpop.f32.mrb[0].mxu0
    %v1080 = vadd.f32 0.0, %v1079
    %v1081 = vpop.f32.mrb[0].mxu0
    %1082 = vmatprep.mubr.bf16.mxu0 0
    %1083 = vmatmul.mubr.bf16.gmra.mrb[0].mxu0 %v949
    %v1084 = vpop.f32.mrb[0].mxu0
    %v1085 = vadd.f32 0.0, %v1084
    %v1086 = vpop.f32.mrb[0].mxu0
    %v1087 = vpop.f32.mrb[0].mxu0
    %v1088 = vadd.f32 0.0, %v1087
    %v1089 = vpop.f32.mrb[0].mxu0
    %1090 = vmatprep.mubr.bf16.mxu0 0
    %1091 = vmatmul.mubr.bf16.gmra.mrb[0].mxu0 %v950
    %v1092 = vpop.f32.mrb[0].mxu0
    %v1093 = vadd.f32 0.0, %v1092
    %v1094 = vpop.f32.mrb[0].mxu0
    %v1095 = vpop.f32.mrb[0].mxu0
    %v1096 = vadd.f32 0.0, %v1095
    %v1097 = vpop.f32.mrb[0].mxu0
    %1098 = vmatprep.mubr.bf16.mxu0 0
    %1099 = vmatmul.mubr.bf16.gmra.mrb[0].mxu0 %v951
    %v1100 = vpop.f32.mrb[0].mxu0
    %v1101 = vadd.f32 0.0, %v1100
    %v1102 = vpop.f32.mrb[0].mxu0
    %v1103 = vpop.f32.mrb[0].mxu0
    %v1104 = vadd.f32 0.0, %v1103
    %v1105 = vpop.f32.mrb[0].mxu0
    %1106 = vmatprep.mubr.bf16.mxu0 0
    %1107 = vmatmul.mubr.bf16.gmra.mrb[0].mxu0 %v952
    %v1108 = vpop.f32.mrb[0].mxu0
    %v1109 = vadd.f32 0.0, %v1108
    %v1110 = vpop.f32.mrb[0].mxu0
    %v1111 = vpop.f32.mrb[0].mxu0
    %v1112 = vadd.f32 0.0, %v1111
    %v1113 = vpop.f32.mrb[0].mxu0
    %1114 = vdwg.mxu0
    %v1131 = vunpack.c.l.b16 %v929
    %v1132 = vunpack.c.l.b16 %v930
    %v1133 = vunpack.c.l.b16 %v931
    %v1134 = vunpack.c.l.b16 %v932
    %v1135 = vunpack.c.l.b16 %v933
    %v1136 = vunpack.c.l.b16 %v934
    %v1137 = vunpack.c.l.b16 %v935
    %v1138 = vunpack.c.l.b16 %v936
    %v1139 = vunpack.c.l.b16 %v937
    %v1140 = vunpack.c.l.b16 %v938
    %v1141 = vunpack.c.l.b16 %v939
    %v1142 = vunpack.c.l.b16 %v940
    %v1143 = vunpack.c.l.b16 %v941
    %v1144 = vunpack.c.l.b16 %v942
    %v1145 = vunpack.c.l.b16 %v943
    %v1146 = vunpack.c.l.b16 %v944
    %v1147 = vpack.c.b16 %v1132, %v1131
    %v1148 = vpack.c.b16 %v1134, %v1133
    %v1149 = vpack.c.b16 %v1136, %v1135
    %v1150 = vpack.c.b16 %v1138, %v1137
    %v1151 = vpack.c.b16 %v1140, %v1139
    %v1152 = vpack.c.b16 %v1142, %v1141
    %v1153 = vpack.c.b16 %v1144, %v1143
    %v1154 = vpack.c.b16 %v1146, %v1145
    %1163 = vmatprep.subr.bf16.mxu0 0
    %1164 = vmatpush1.bf16.msra.mxu0 %v1147
    %1165 = vmatprep.subr.bf16.mxu0 0
    %1166 = vmatpush1.bf16.msra.mxu0 %v1148
    %1167 = vmatprep.subr.bf16.mxu0 0
    %1168 = vmatpush1.bf16.msra.mxu0 %v1149
    %1169 = vmatprep.subr.bf16.mxu0 0
    %1170 = vmatpush1.bf16.msra.mxu0 %v1150
    %1171 = vmatprep.subr.bf16.mxu0 0
    %1172 = vmatpush1.bf16.msra.mxu0 %v1151
    %1173 = vmatprep.subr.bf16.mxu0 0
    %1174 = vmatpush1.bf16.msra.mxu0 %v1152
    %1175 = vmatprep.subr.bf16.mxu0 0
    %1176 = vmatpush1.bf16.msra.mxu0 %v1153
    %1177 = vmatprep.subr.bf16.mxu0 0
    %1178 = vmatpush1.bf16.msra.mxu0 %v1154
    %1179 = vmatprep.subr.bf16.mxu0 0
    %1180 = vmatpush1.bf16.msra.mxu0 0
    %1181 = vmatprep.subr.bf16.mxu0 0
    %1182 = vmatpush1.bf16.msra.mxu0 0
    %1183 = vmatprep.subr.bf16.mxu0 0
    %1184 = vmatpush1.bf16.msra.mxu0 0
    %1185 = vmatprep.subr.bf16.mxu0 0
    %1186 = vmatpush1.bf16.msra.mxu0 0
    %1187 = vmatprep.subr.bf16.mxu0 0
    %1188 = vmatpush1.bf16.msra.mxu0 0
    %1189 = vmatprep.subr.bf16.mxu0 0
    %1190 = vmatpush1.bf16.msra.mxu0 0
    %1191 = vmatprep.subr.bf16.mxu0 0
    %1192 = vmatpush1.bf16.msra.mxu0 0
    %1193 = vmatprep.subr.bf16.mxu0 0
    %1194 = vmatpush1.bf16.msra.mxu0 0
    %1195 = vmatprep.mubr.bf16.mxu0 0
    %1196 = vmatmul.mubr.bf16.gmra.mrb[0].mxu0 %v920
    %v1197 = vpop.f32.mrb[0].mxu0
    %v1198 = vadd.f32 %v1053, %v1197
    %v1199 = vpop.f32.mrb[0].mxu0
    %v1200 = vpop.f32.mrb[0].mxu0
    %v1201 = vadd.f32 %v1056, %v1200
    %v1202 = vpop.f32.mrb[0].mxu0
    %1203 = vmatprep.mubr.bf16.mxu0 0
    %1204 = vmatmul.mubr.bf16.gmra.mrb[0].mxu0 %v921
    %v1205 = vpop.f32.mrb[0].mxu0
    %v1206 = vadd.f32 %v1061, %v1205
    %v1207 = vpop.f32.mrb[0].mxu0
    %v1208 = vpop.f32.mrb[0].mxu0
    %v1209 = vadd.f32 %v1064, %v1208
    %v1210 = vpop.f32.mrb[0].mxu0
    %1211 = vmatprep.mubr.bf16.mxu0 0
    %1212 = vmatmul.mubr.bf16.gmra.mrb[0].mxu0 %v922
    %v1213 = vpop.f32.mrb[0].mxu0
    %v1214 = vadd.f32 %v1069, %v1213
    %v1215 = vpop.f32.mrb[0].mxu0
    %v1216 = vpop.f32.mrb[0].mxu0
    %v1217 = vadd.f32 %v1072, %v1216
    %v1218 = vpop.f32.mrb[0].mxu0
    %1219 = vmatprep.mubr.bf16.mxu0 0
    %1220 = vmatmul.mubr.bf16.gmra.mrb[0].mxu0 %v923
    %v1221 = vpop.f32.mrb[0].mxu0
    %v1222 = vadd.f32 %v1077, %v1221
    %v1223 = vpop.f32.mrb[0].mxu0
    %v1224 = vpop.f32.mrb[0].mxu0
    %v1225 = vadd.f32 %v1080, %v1224
    %v1226 = vpop.f32.mrb[0].mxu0
    %1227 = vmatprep.mubr.bf16.mxu0 0
    %1228 = vmatmul.mubr.bf16.gmra.mrb[0].mxu0 %v924
    %v1229 = vpop.f32.mrb[0].mxu0
    %v1230 = vadd.f32 %v1085, %v1229
    %v1231 = vpop.f32.mrb[0].mxu0
    %v1232 = vpop.f32.mrb[0].mxu0
    %v1233 = vadd.f32 %v1088, %v1232
    %v1234 = vpop.f32.mrb[0].mxu0
    %1235 = vmatprep.mubr.bf16.mxu0 0
    %1236 = vmatmul.mubr.bf16.gmra.mrb[0].mxu0 %v925
    %v1237 = vpop.f32.mrb[0].mxu0
    %v1238 = vadd.f32 %v1093, %v1237
    %v1239 = vpop.f32.mrb[0].mxu0
    %v1240 = vpop.f32.mrb[0].mxu0
    %v1241 = vadd.f32 %v1096, %v1240
    %v1242 = vpop.f32.mrb[0].mxu0
    %1243 = vmatprep.mubr.bf16.mxu0 0
    %1244 = vmatmul.mubr.bf16.gmra.mrb[0].mxu0 %v926
    %v1245 = vpop.f32.mrb[0].mxu0
    %v1246 = vadd.f32 %v1101, %v1245
    %v1247 = vpop.f32.mrb[0].mxu0
    %v1248 = vpop.f32.mrb[0].mxu0
    %v1249 = vadd.f32 %v1104, %v1248
    %v1250 = vpop.f32.mrb[0].mxu0
    %1251 = vmatprep.mubr.bf16.mxu0 0
    %1252 = vmatmul.mubr.bf16.gmra.mrb[0].mxu0 %v927
    %v1253 = vpop.f32.mrb[0].mxu0
    %v1254 = vadd.f32 %v1109, %v1253
    %v1255 = vpop.f32.mrb[0].mxu0
    %v1256 = vpop.f32.mrb[0].mxu0
    %v1257 = vadd.f32 %v1112, %v1256
    %v1258 = vpop.f32.mrb[0].mxu0
    %1259 = vdwg.mxu0
    %v1260 = vpack.c.bf16 %v905, %v904
    %v1261 = vpack.c.bf16 %v907, %v906
    %v1262 = vpack.c.bf16 %v909, %v908
    %v1263 = vpack.c.bf16 %v911, %v910
    %v1264 = vpack.c.bf16 %v913, %v912
    %v1265 = vpack.c.bf16 %v915, %v914
    %v1266 = vpack.c.bf16 %v917, %v916
    %v1267 = vpack.c.bf16 %v919, %v918
    %s1268 = scalar_lea.vmem [#allocation6], 320
    %v1269 = vld [vmem:[%s1268] sm:$0xf]
    %v1270 = vld [vmem:[%s1268 + $0x4] sm:$0xf]
    %v1271 = vld [vmem:[%s1268 + $0x8] sm:$0xf]
    %v1272 = vld [vmem:[%s1268 + $0xc] sm:$0xf]
    %v1273 = vld [vmem:[%s1268 + $0x10] sm:$0xf]
    %v1274 = vld [vmem:[%s1268 + $0x14] sm:$0xf]
    %v1275 = vld [vmem:[%s1268 + $0x18] sm:$0xf]
    %v1276 = vld [vmem:[%s1268 + $0x1c] sm:$0xf]
    %v1277 = vld [vmem:[%s1268 + $0x20] sm:$0xf]
    %v1278 = vld [vmem:[%s1268 + $0x24] sm:$0xf]
    %v1279 = vld [vmem:[%s1268 + $0x28] sm:$0xf]
    %v1280 = vld [vmem:[%s1268 + $0x2c] sm:$0xf]
    %v1281 = vld [vmem:[%s1268 + $0x30] sm:$0xf]
    %v1282 = vld [vmem:[%s1268 + $0x34] sm:$0xf]
    %v1283 = vld [vmem:[%s1268 + $0x38] sm:$0xf]
    %v1284 = vld [vmem:[%s1268 + $0x3c] sm:$0xf]
    %v1301 = vunpack.c.l.b16 %v1269
    %v1302 = vunpack.c.l.b16 %v1270
    %v1303 = vunpack.c.l.b16 %v1271
    %v1304 = vunpack.c.l.b16 %v1272
    %v1305 = vunpack.c.l.b16 %v1273
    %v1306 = vunpack.c.l.b16 %v1274
    %v1307 = vunpack.c.l.b16 %v1275
    %v1308 = vunpack.c.l.b16 %v1276
    %v1309 = vunpack.c.l.b16 %v1277
    %v1310 = vunpack.c.l.b16 %v1278
    %v1311 = vunpack.c.l.b16 %v1279
    %v1312 = vunpack.c.l.b16 %v1280
    %v1313 = vunpack.c.l.b16 %v1281
    %v1314 = vunpack.c.l.b16 %v1282
    %v1315 = vunpack.c.l.b16 %v1283
    %v1316 = vunpack.c.l.b16 %v1284
    %v1317 = vpack.c.b16 %v1302, %v1301
    %v1318 = vpack.c.b16 %v1304, %v1303
    %v1319 = vpack.c.b16 %v1306, %v1305
    %v1320 = vpack.c.b16 %v1308, %v1307
    %v1321 = vpack.c.b16 %v1310, %v1309
    %v1322 = vpack.c.b16 %v1312, %v1311
    %v1323 = vpack.c.b16 %v1314, %v1313
    %v1324 = vpack.c.b16 %v1316, %v1315
    %1333 = vmatprep.subr.bf16.mxu0 0
    %1334 = vmatpush1.bf16.msra.mxu0 %v1317
    %1335 = vmatprep.subr.bf16.mxu0 0
    %1336 = vmatpush1.bf16.msra.mxu0 %v1318
    %1337 = vmatprep.subr.bf16.mxu0 0
    %1338 = vmatpush1.bf16.msra.mxu0 %v1319
    %1339 = vmatprep.subr.bf16.mxu0 0
    %1340 = vmatpush1.bf16.msra.mxu0 %v1320
    %1341 = vmatprep.subr.bf16.mxu0 0
    %1342 = vmatpush1.bf16.msra.mxu0 %v1321
    %1343 = vmatprep.subr.bf16.mxu0 0
    %1344 = vmatpush1.bf16.msra.mxu0 %v1322
    %1345 = vmatprep.subr.bf16.mxu0 0
    %1346 = vmatpush1.bf16.msra.mxu0 %v1323
    %1347 = vmatprep.subr.bf16.mxu0 0
    %1348 = vmatpush1.bf16.msra.mxu0 %v1324
    %1349 = vmatprep.subr.bf16.mxu0 0
    %1350 = vmatpush1.bf16.msra.mxu0 0
    %1351 = vmatprep.subr.bf16.mxu0 0
    %1352 = vmatpush1.bf16.msra.mxu0 0
    %1353 = vmatprep.subr.bf16.mxu0 0
    %1354 = vmatpush1.bf16.msra.mxu0 0
    %1355 = vmatprep.subr.bf16.mxu0 0
    %1356 = vmatpush1.bf16.msra.mxu0 0
    %1357 = vmatprep.subr.bf16.mxu0 0
    %1358 = vmatpush1.bf16.msra.mxu0 0
    %1359 = vmatprep.subr.bf16.mxu0 0
    %1360 = vmatpush1.bf16.msra.mxu0 0
    %1361 = vmatprep.subr.bf16.mxu0 0
    %1362 = vmatpush1.bf16.msra.mxu0 0
    %1363 = vmatprep.subr.bf16.mxu0 0
    %1364 = vmatpush1.bf16.msra.mxu0 0
    %1365 = vmatprep.mubr.bf16.mxu0 0
    %1366 = vmatmul.mubr.bf16.gmra.mrb[0].mxu0 %v1260
    %v1367 = vpop.f32.mrb[0].mxu0
    %v1368 = vadd.f32 0.0, %v1367
    %v1369 = vpop.f32.mrb[0].mxu0
    %v1370 = vpop.f32.mrb[0].mxu0
    %v1371 = vadd.f32 0.0, %v1370
    %v1372 = vpop.f32.mrb[0].mxu0
    %1373 = vmatprep.mubr.bf16.mxu0 0
    %1374 = vmatmul.mubr.bf16.gmra.mrb[0].mxu0 %v1261
    %v1375 = vpop.f32.mrb[0].mxu0
    %v1376 = vadd.f32 0.0, %v1375
    %v1377 = vpop.f32.mrb[0].mxu0
    %v1378 = vpop.f32.mrb[0].mxu0
    %v1379 = vadd.f32 0.0, %v1378
    %v1380 = vpop.f32.mrb[0].mxu0
    %1381 = vmatprep.mubr.bf16.mxu0 0
    %1382 = vmatmul.mubr.bf16.gmra.mrb[0].mxu0 %v1262
    %v1383 = vpop.f32.mrb[0].mxu0
    %v1384 = vadd.f32 0.0, %v1383
    %v1385 = vpop.f32.mrb[0].mxu0
    %v1386 = vpop.f32.mrb[0].mxu0
    %v1387 = vadd.f32 0.0, %v1386
    %v1388 = vpop.f32.mrb[0].mxu0
    %1389 = vmatprep.mubr.bf16.mxu0 0
    %1390 = vmatmul.mubr.bf16.gmra.mrb[0].mxu0 %v1263
    %v1391 = vpop.f32.mrb[0].mxu0
    %v1392 = vadd.f32 0.0, %v1391
    %v1393 = vpop.f32.mrb[0].mxu0
    %v1394 = vpop.f32.mrb[0].mxu0
    %v1395 = vadd.f32 0.0, %v1394
    %v1396 = vpop.f32.mrb[0].mxu0
    %1397 = vmatprep.mubr.bf16.mxu0 0
    %1398 = vmatmul.mubr.bf16.gmra.mrb[0].mxu0 %v1264
    %v1399 = vpop.f32.mrb[0].mxu0
    %v1400 = vadd.f32 0.0, %v1399
    %v1401 = vpop.f32.mrb[0].mxu0
    %v1402 = vpop.f32.mrb[0].mxu0
    %v1403 = vadd.f32 0.0, %v1402
    %v1404 = vpop.f32.mrb[0].mxu0
    %1405 = vmatprep.mubr.bf16.mxu0 0
    %1406 = vmatmul.mubr.bf16.gmra.mrb[0].mxu0 %v1265
    %v1407 = vpop.f32.mrb[0].mxu0
    %v1408 = vadd.f32 0.0, %v1407
    %v1409 = vpop.f32.mrb[0].mxu0
    %v1410 = vpop.f32.mrb[0].mxu0
    %v1411 = vadd.f32 0.0, %v1410
    %v1412 = vpop.f32.mrb[0].mxu0
    %1413 = vmatprep.mubr.bf16.mxu0 0
    %1414 = vmatmul.mubr.bf16.gmra.mrb[0].mxu0 %v1266
    %v1415 = vpop.f32.mrb[0].mxu0
    %v1416 = vadd.f32 0.0, %v1415
    %v1417 = vpop.f32.mrb[0].mxu0
    %v1418 = vpop.f32.mrb[0].mxu0
    %v1419 = vadd.f32 0.0, %v1418
    %v1420 = vpop.f32.mrb[0].mxu0
    %1421 = vmatprep.mubr.bf16.mxu0 0
    %1422 = vmatmul.mubr.bf16.gmra.mrb[0].mxu0 %v1267
    %v1423 = vpop.f32.mrb[0].mxu0
    %v1424 = vadd.f32 0.0, %v1423
    %v1425 = vpop.f32.mrb[0].mxu0
    %v1426 = vpop.f32.mrb[0].mxu0
    %v1427 = vadd.f32 0.0, %v1426
    %v1428 = vpop.f32.mrb[0].mxu0
    %1429 = vdwg.mxu0
    %v1430 = vadd.f32 %v1198, %v1368
    %v1431 = vadd.f32 %v1201, %v1371
    %v1432 = vadd.f32 %v1206, %v1376
    %v1433 = vadd.f32 %v1209, %v1379
    %v1434 = vadd.f32 %v1214, %v1384
    %v1435 = vadd.f32 %v1217, %v1387
    %v1436 = vadd.f32 %v1222, %v1392
    %v1437 = vadd.f32 %v1225, %v1395
    %v1438 = vadd.f32 %v1230, %v1400
    %v1439 = vadd.f32 %v1233, %v1403
    %v1440 = vadd.f32 %v1238, %v1408
    %v1441 = vadd.f32 %v1241, %v1411
    %v1442 = vadd.f32 %v1246, %v1416
    %v1443 = vadd.f32 %v1249, %v1419
    %v1444 = vadd.f32 %v1254, %v1424
    %v1445 = vadd.f32 %v1257, %v1427
    %v1446 = vlaneseq
    %v1447 = vshrl.u32 %v1446, 7
    %v1448 = vsub.s32 0, %v1447
    %v1449 = vrot.slane %v871, %v1448
    %v1450 = vadd.f32 %v1430, %v1449
    %v1451 = vadd.f32 %v1431, %v1449
    %v1452 = vadd.f32 %v1432, %v1449
    %v1453 = vadd.f32 %v1433, %v1449
    %v1454 = vadd.f32 %v1434, %v1449
    %v1455 = vadd.f32 %v1435, %v1449
    %v1456 = vadd.f32 %v1436, %v1449
    %v1457 = vadd.f32 %v1437, %v1449
    %v1458 = vadd.f32 %v1438, %v1449
    %v1459 = vadd.f32 %v1439, %v1449
    %v1460 = vadd.f32 %v1440, %v1449
    %v1461 = vadd.f32 %v1441, %v1449
    %v1462 = vadd.f32 %v1442, %v1449
    %v1463 = vadd.f32 %v1443, %v1449
    %v1464 = vadd.f32 %v1444, %v1449
    %v1465 = vadd.f32 %v1445, %v1449
    %v1466 = vadd.f32 %v1450, %v872
    %v1467 = vadd.f32 %v1451, %v873
    %v1468 = vadd.f32 %v1452, %v874
    %v1469 = vadd.f32 %v1453, %v875
    %v1470 = vadd.f32 %v1454, %v876
    %v1471 = vadd.f32 %v1455, %v877
    %v1472 = vadd.f32 %v1456, %v878
    %v1473 = vadd.f32 %v1457, %v879
    %v1474 = vadd.f32 %v1458, %v880
    %v1475 = vadd.f32 %v1459, %v881
    %v1476 = vadd.f32 %v1460, %v882
    %v1477 = vadd.f32 %v1461, %v883
    %v1478 = vadd.f32 %v1462, %v884
    %v1479 = vadd.f32 %v1463, %v885
    %v1480 = vadd.f32 %v1464, %v886
    %v1481 = vadd.f32 %v1465, %v887
    %v1482 = vmul.f32 %v1466, 0.2
    %v1483 = vmul.f32 %v1467, 0.2
    %v1484 = vmul.f32 %v1468, 0.2
    %v1485 = vmul.f32 %v1469, 0.2
    %v1486 = vmul.f32 %v1470, 0.2
    %v1487 = vmul.f32 %v1471, 0.2
    %v1488 = vmul.f32 %v1472, 0.2
    %v1489 = vmul.f32 %v1473, 0.2
    %v1490 = vmul.f32 %v1474, 0.2
    %v1491 = vmul.f32 %v1475, 0.2
    %v1492 = vmul.f32 %v1476, 0.2
    %v1493 = vmul.f32 %v1477, 0.2
    %v1494 = vmul.f32 %v1478, 0.2
    %v1495 = vmul.f32 %v1479, 0.2
    %v1496 = vmul.f32 %v1480, 0.2
    %v1497 = vmul.f32 %v1481, 0.2
    %v1498 = vmax.f32 %v1466, %v1482
    %v1499 = vmax.f32 %v1467, %v1483
    %v1500 = vmax.f32 %v1468, %v1484
    %v1501 = vmax.f32 %v1469, %v1485
    %v1502 = vmax.f32 %v1470, %v1486
    %v1503 = vmax.f32 %v1471, %v1487
    %v1504 = vmax.f32 %v1472, %v1488
    %v1505 = vmax.f32 %v1473, %v1489
    %v1506 = vmax.f32 %v1474, %v1490
    %v1507 = vmax.f32 %v1475, %v1491
    %v1508 = vmax.f32 %v1476, %v1492
    %v1509 = vmax.f32 %v1477, %v1493
    %v1510 = vmax.f32 %v1478, %v1494
    %v1511 = vmax.f32 %v1479, %v1495
    %v1512 = vmax.f32 %v1480, %v1496
    %v1513 = vmax.f32 %v1481, %v1497
    %v1514 = vadd.f32 %v1498, %v1499
    %v1515 = vadd.f32 %v1514, %v1500
    %v1516 = vadd.f32 %v1515, %v1501
    %v1517 = vadd.f32 %v1516, %v1502
    %v1518 = vadd.f32 %v1517, %v1503
    %v1519 = vadd.f32 %v1518, %v1504
    %v1520 = vadd.f32 %v1519, %v1505
    %v1521 = vadd.f32 %v1520, %v1506
    %v1522 = vadd.f32 %v1521, %v1507
    %v1523 = vadd.f32 %v1522, %v1508
    %v1524 = vadd.f32 %v1523, %v1509
    %v1525 = vadd.f32 %v1524, %v1510
    %v1526 = vadd.f32 %v1525, %v1511
    %v1527 = vadd.f32 %v1526, %v1512
    %v1528 = vadd.f32 %v1527, %v1513
    %v1529 = vrot.slane %v1528, 4
    %v1530 = vadd.f32 %v1528, %v1529
    %v1531 = vrot.slane %v1530, 2
    %v1532 = vadd.f32 %v1530, %v1531
    %v1533 = vrot.slane %v1532, 1
    %v1534 = vadd.f32 %v1532, %v1533
    %v1535 = vmul.f32 %v1534, 0.0078125
    %v1536 = vsub.f32 %v1498, %v1535
    %v1537 = vsub.f32 %v1499, %v1535
    %v1538 = vsub.f32 %v1500, %v1535
    %v1539 = vsub.f32 %v1501, %v1535
    %v1540 = vsub.f32 %v1502, %v1535
    %v1541 = vsub.f32 %v1503, %v1535
    %v1542 = vsub.f32 %v1504, %v1535
    %v1543 = vsub.f32 %v1505, %v1535
    %v1544 = vsub.f32 %v1506, %v1535
    %v1545 = vsub.f32 %v1507, %v1535
    %v1546 = vsub.f32 %v1508, %v1535
    %v1547 = vsub.f32 %v1509, %v1535
    %v1548 = vsub.f32 %v1510, %v1535
    %v1549 = vsub.f32 %v1511, %v1535
    %v1550 = vsub.f32 %v1512, %v1535
    %v1551 = vsub.f32 %v1513, %v1535
    %v1552 = vmul.f32 %v1536, %v1536
    %v1553 = vmul.f32 %v1537, %v1537
    %v1554 = vmul.f32 %v1538, %v1538
    %v1555 = vmul.f32 %v1539, %v1539
    %v1556 = vmul.f32 %v1540, %v1540
    %v1557 = vmul.f32 %v1541, %v1541
    %v1558 = vmul.f32 %v1542, %v1542
    %v1559 = vmul.f32 %v1543, %v1543
    %v1560 = vmul.f32 %v1544, %v1544
    %v1561 = vmul.f32 %v1545, %v1545
    %v1562 = vmul.f32 %v1546, %v1546
    %v1563 = vmul.f32 %v1547, %v1547
    %v1564 = vmul.f32 %v1548, %v1548
    %v1565 = vmul.f32 %v1549, %v1549
    %v1566 = vmul.f32 %v1550, %v1550
    %v1567 = vmul.f32 %v1551, %v1551
    %v1568 = vadd.f32 %v1552, %v1553
    %v1569 = vadd.f32 %v1568, %v1554
    %v1570 = vadd.f32 %v1569, %v1555
    %v1571 = vadd.f32 %v1570, %v1556
    %v1572 = vadd.f32 %v1571, %v1557
    %v1573 = vadd.f32 %v1572, %v1558
    %v1574 = vadd.f32 %v1573, %v1559
    %v1575 = vadd.f32 %v1574, %v1560
    %v1576 = vadd.f32 %v1575, %v1561
    %v1577 = vadd.f32 %v1576, %v1562
    %v1578 = vadd.f32 %v1577, %v1563
    %v1579 = vadd.f32 %v1578, %v1564
    %v1580 = vadd.f32 %v1579, %v1565
    %v1581 = vadd.f32 %v1580, %v1566
    %v1582 = vadd.f32 %v1581, %v1567
    %v1583 = vrot.slane %v1582, 4
    %v1584 = vadd.f32 %v1582, %v1583
    %v1585 = vrot.slane %v1584, 2
    %v1586 = vadd.f32 %v1584, %v1585
    %v1587 = vrot.slane %v1586, 1
    %v1588 = vadd.f32 %v1586, %v1587
    %v1589 = vmul.f32 %v1588, 0.0078125
    %v1590 = vadd.f32 %v1589, 1e-05
    %v1591 = vrsqrt.pop %v1590
    %v1592 = vmul.f32 %v1591, %v871
    %v1593 = vlaneseq
    %v1594 = vshrl.u32 %v1593, 7
    %v1595 = vsub.s32 1, %v1594
    %v1596 = vrot.slane %v1592, %v1595
    %v1597 = vmul.f32 %v1536, %v1596
    %v1598 = vmul.f32 %v1537, %v1596
    %v1599 = vmul.f32 %v1538, %v1596
    %v1600 = vmul.f32 %v1539, %v1596
    %v1601 = vmul.f32 %v1540, %v1596
    %v1602 = vmul.f32 %v1541, %v1596
    %v1603 = vmul.f32 %v1542, %v1596
    %v1604 = vmul.f32 %v1543, %v1596
    %v1605 = vmul.f32 %v1544, %v1596
    %v1606 = vmul.f32 %v1545, %v1596
    %v1607 = vmul.f32 %v1546, %v1596
    %v1608 = vmul.f32 %v1547, %v1596
    %v1609 = vmul.f32 %v1548, %v1596
    %v1610 = vmul.f32 %v1549, %v1596
    %v1611 = vmul.f32 %v1550, %v1596
    %v1612 = vmul.f32 %v1551, %v1596
    %v1613 = vlaneseq
    %v1614 = vshrl.u32 %v1613, 7
    %v1615 = vsub.s32 2, %v1614
    %v1616 = vrot.slane %v871, %v1615
    %v1617 = vadd.f32 %v1597, %v1616
    %v1618 = vadd.f32 %v1598, %v1616
    %v1619 = vadd.f32 %v1599, %v1616
    %v1620 = vadd.f32 %v1600, %v1616
    %v1621 = vadd.f32 %v1601, %v1616
    %v1622 = vadd.f32 %v1602, %v1616
    %v1623 = vadd.f32 %v1603, %v1616
    %v1624 = vadd.f32 %v1604, %v1616
    %v1625 = vadd.f32 %v1605, %v1616
    %v1626 = vadd.f32 %v1606, %v1616
    %v1627 = vadd.f32 %v1607, %v1616
    %v1628 = vadd.f32 %v1608, %v1616
    %v1629 = vadd.f32 %v1609, %v1616
    %v1630 = vadd.f32 %v1610, %v1616
    %v1631 = vadd.f32 %v1611, %v1616
    %v1632 = vadd.f32 %v1612, %v1616
    %1633 = vst [vmem:[#allocation2 + $0x8] sm:$0xff] %v1617
    %1634 = vst [vmem:[#allocation2 + $0x10] sm:$0xff] %v1618
    %1635 = vst [vmem:[#allocation2 + $0x18] sm:$0xff] %v1619
    %1636 = vst [vmem:[#allocation2 + $0x20] sm:$0xff] %v1620
    %1637 = vst [vmem:[#allocation2 + $0x28] sm:$0xff] %v1621
    %1638 = vst [vmem:[#allocation2 + $0x30] sm:$0xff] %v1622
    %1639 = vst [vmem:[#allocation2 + $0x38] sm:$0xff] %v1623
    %1640 = vst [vmem:[#allocation2 + $0x40] sm:$0xff] %v1624
    %1641 = vst [vmem:[#allocation2 + $0x58] sm:$0xff] %v1625
    %1642 = vst [vmem:[#allocation2 + $0x60] sm:$0xff] %v1626
    %1643 = vst [vmem:[#allocation2 + $0x68] sm:$0xff] %v1627
    %1644 = vst [vmem:[#allocation2 + $0x70] sm:$0xff] %v1628
    %1645 = vst [vmem:[#allocation2 + $0x78] sm:$0xff] %v1629
    %1646 = vst [vmem:[#allocation2 + $0x80] sm:$0xff] %v1630
    %1647 = vst [vmem:[#allocation2 + $0x88] sm:$0xff] %v1631
    %1648 = vst [vmem:[#allocation2 + $0x90] sm:$0xff] %v1632
    %s1649 = scalar_lea.vmem [#allocation8], 8
    %v1650 = vld [vmem:[%s1649] sm:$0x7]
    %v1651 = vld [vmem:[#allocation2 + $0x8] sm:$0xff]
    %v1652 = vld [vmem:[#allocation2 + $0x10] sm:$0xff]
    %v1653 = vld [vmem:[#allocation2 + $0x18] sm:$0xff]
    %v1654 = vld [vmem:[#allocation2 + $0x20] sm:$0xff]
    %v1655 = vld [vmem:[#allocation2 + $0x28] sm:$0xff]
    %v1656 = vld [vmem:[#allocation2 + $0x30] sm:$0xff]
    %v1657 = vld [vmem:[#allocation2 + $0x38] sm:$0xff]
    %v1658 = vld [vmem:[#allocation2 + $0x40] sm:$0xff]
    %v1659 = vld [vmem:[#allocation2 + $0x58] sm:$0xff]
    %v1660 = vld [vmem:[#allocation2 + $0x60] sm:$0xff]
    %v1661 = vld [vmem:[#allocation2 + $0x68] sm:$0xff]
    %v1662 = vld [vmem:[#allocation2 + $0x70] sm:$0xff]
    %v1663 = vld [vmem:[#allocation2 + $0x78] sm:$0xff]
    %v1664 = vld [vmem:[#allocation2 + $0x80] sm:$0xff]
    %v1665 = vld [vmem:[#allocation2 + $0x88] sm:$0xff]
    %v1666 = vld [vmem:[#allocation2 + $0x90] sm:$0xff]
    %v1667 = vld [vmem:[#allocation2 + $0x4] sm:$0xff]
    %v1668 = vld [vmem:[#allocation2 + $0xc] sm:$0xff]
    %v1669 = vld [vmem:[#allocation2 + $0x14] sm:$0xff]
    %v1670 = vld [vmem:[#allocation2 + $0x1c] sm:$0xff]
    %v1671 = vld [vmem:[#allocation2 + $0x24] sm:$0xff]
    %v1672 = vld [vmem:[#allocation2 + $0x2c] sm:$0xff]
    %v1673 = vld [vmem:[#allocation2 + $0x34] sm:$0xff]
    %v1674 = vld [vmem:[#allocation2 + $0x3c] sm:$0xff]
    %v1675 = vld [vmem:[#allocation2 + $0x54] sm:$0xff]
    %v1676 = vld [vmem:[#allocation2 + $0x5c] sm:$0xff]
    %v1677 = vld [vmem:[#allocation2 + $0x64] sm:$0xff]
    %v1678 = vld [vmem:[#allocation2 + $0x6c] sm:$0xff]
    %v1679 = vld [vmem:[#allocation2 + $0x74] sm:$0xff]
    %v1680 = vld [vmem:[#allocation2 + $0x7c] sm:$0xff]
    %v1681 = vld [vmem:[#allocation2 + $0x84] sm:$0xff]
    %v1682 = vld [vmem:[#allocation2 + $0x8c] sm:$0xff]
    %v1683 = vld [vmem:[#allocation2 + $0x44] sm:$0xff]
    %v1684 = vld [vmem:[#allocation2 + $0x94] sm:$0xff]
    %v1685 = vpack.c.bf16 %v1652, %v1651
    %v1686 = vpack.c.bf16 %v1654, %v1653
    %v1687 = vpack.c.bf16 %v1656, %v1655
    %v1688 = vpack.c.bf16 %v1658, %v1657
    %v1689 = vpack.c.bf16 %v1660, %v1659
    %v1690 = vpack.c.bf16 %v1662, %v1661
    %v1691 = vpack.c.bf16 %v1664, %v1663
    %v1692 = vpack.c.bf16 %v1666, %v1665
    %s1693 = scalar_lea.vmem [#allocation6], 448
    %v1694 = vld [vmem:[%s1693] sm:$0xf]
    %v1695 = vld [vmem:[%s1693 + $0x4] sm:$0xf]
    %v1696 = vld [vmem:[%s1693 + $0x8] sm:$0xf]
    %v1697 = vld [vmem:[%s1693 + $0xc] sm:$0xf]
    %v1698 = vld [vmem:[%s1693 + $0x10] sm:$0xf]
    %v1699 = vld [vmem:[%s1693 + $0x14] sm:$0xf]
    %v1700 = vld [vmem:[%s1693 + $0x18] sm:$0xf]
    %v1701 = vld [vmem:[%s1693 + $0x1c] sm:$0xf]
    %v1702 = vld [vmem:[%s1693 + $0x20] sm:$0xf]
    %v1703 = vld [vmem:[%s1693 + $0x24] sm:$0xf]
    %v1704 = vld [vmem:[%s1693 + $0x28] sm:$0xf]
    %v1705 = vld [vmem:[%s1693 + $0x2c] sm:$0xf]
    %v1706 = vld [vmem:[%s1693 + $0x30] sm:$0xf]
    %v1707 = vld [vmem:[%s1693 + $0x34] sm:$0xf]
    %v1708 = vld [vmem:[%s1693 + $0x38] sm:$0xf]
    %v1709 = vld [vmem:[%s1693 + $0x3c] sm:$0xf]
    %v1710 = vpack.c.bf16 %v1668, %v1667
    %v1711 = vpack.c.bf16 %v1670, %v1669
    %v1712 = vpack.c.bf16 %v1672, %v1671
    %v1713 = vpack.c.bf16 %v1674, %v1673
    %v1714 = vpack.c.bf16 %v1676, %v1675
    %v1715 = vpack.c.bf16 %v1678, %v1677
    %v1716 = vpack.c.bf16 %v1680, %v1679
    %v1717 = vpack.c.bf16 %v1682, %v1681
    %s1718 = scalar_lea.vmem [#allocation6], 384
    %v1719 = vld [vmem:[%s1718] sm:$0xf]
    %v1720 = vld [vmem:[%s1718 + $0x4] sm:$0xf]
    %v1721 = vld [vmem:[%s1718 + $0x8] sm:$0xf]
    %v1722 = vld [vmem:[%s1718 + $0xc] sm:$0xf]
    %v1723 = vld [vmem:[%s1718 + $0x10] sm:$0xf]
    %v1724 = vld [vmem:[%s1718 + $0x14] sm:$0xf]
    %v1725 = vld [vmem:[%s1718 + $0x18] sm:$0xf]
    %v1726 = vld [vmem:[%s1718 + $0x1c] sm:$0xf]
    %v1727 = vld [vmem:[%s1718 + $0x20] sm:$0xf]
    %v1728 = vld [vmem:[%s1718 + $0x24] sm:$0xf]
    %v1729 = vld [vmem:[%s1718 + $0x28] sm:$0xf]
    %v1730 = vld [vmem:[%s1718 + $0x2c] sm:$0xf]
    %v1731 = vld [vmem:[%s1718 + $0x30] sm:$0xf]
    %v1732 = vld [vmem:[%s1718 + $0x34] sm:$0xf]
    %v1733 = vld [vmem:[%s1718 + $0x38] sm:$0xf]
    %v1734 = vld [vmem:[%s1718 + $0x3c] sm:$0xf]
    %v1751 = vunpack.c.l.b16 %v1719
    %v1752 = vunpack.c.l.b16 %v1720
    %v1753 = vunpack.c.l.b16 %v1721
    %v1754 = vunpack.c.l.b16 %v1722
    %v1755 = vunpack.c.l.b16 %v1723
    %v1756 = vunpack.c.l.b16 %v1724
    %v1757 = vunpack.c.l.b16 %v1725
    %v1758 = vunpack.c.l.b16 %v1726
    %v1759 = vunpack.c.l.b16 %v1727
    %v1760 = vunpack.c.l.b16 %v1728
    %v1761 = vunpack.c.l.b16 %v1729
    %v1762 = vunpack.c.l.b16 %v1730
    %v1763 = vunpack.c.l.b16 %v1731
    %v1764 = vunpack.c.l.b16 %v1732
    %v1765 = vunpack.c.l.b16 %v1733
    %v1766 = vunpack.c.l.b16 %v1734
    %v1767 = vpack.c.b16 %v1752, %v1751
    %v1768 = vpack.c.b16 %v1754, %v1753
    %v1769 = vpack.c.b16 %v1756, %v1755
    %v1770 = vpack.c.b16 %v1758, %v1757
    %v1771 = vpack.c.b16 %v1760, %v1759
    %v1772 = vpack.c.b16 %v1762, %v1761
    %v1773 = vpack.c.b16 %v1764, %v1763
    %v1774 = vpack.c.b16 %v1766, %v1765
    %1783 = vmatprep.subr.bf16.mxu0 0
    %1784 = vmatpush1.bf16.msra.mxu0 %v1767
    %1785 = vmatprep.subr.bf16.mxu0 0
    %1786 = vmatpush1.bf16.msra.mxu0 %v1768
    %1787 = vmatprep.subr.bf16.mxu0 0
    %1788 = vmatpush1.bf16.msra.mxu0 %v1769
    %1789 = vmatprep.subr.bf16.mxu0 0
    %1790 = vmatpush1.bf16.msra.mxu0 %v1770
    %1791 = vmatprep.subr.bf16.mxu0 0
    %1792 = vmatpush1.bf16.msra.mxu0 %v1771
    %1793 = vmatprep.subr.bf16.mxu0 0
    %1794 = vmatpush1.bf16.msra.mxu0 %v1772
    %1795 = vmatprep.subr.bf16.mxu0 0
    %1796 = vmatpush1.bf16.msra.mxu0 %v1773
    %1797 = vmatprep.subr.bf16.mxu0 0
    %1798 = vmatpush1.bf16.msra.mxu0 %v1774
    %1799 = vmatprep.subr.bf16.mxu0 0
    %1800 = vmatpush1.bf16.msra.mxu0 0
    %1801 = vmatprep.subr.bf16.mxu0 0
    %1802 = vmatpush1.bf16.msra.mxu0 0
    %1803 = vmatprep.subr.bf16.mxu0 0
    %1804 = vmatpush1.bf16.msra.mxu0 0
    %1805 = vmatprep.subr.bf16.mxu0 0
    %1806 = vmatpush1.bf16.msra.mxu0 0
    %1807 = vmatprep.subr.bf16.mxu0 0
    %1808 = vmatpush1.bf16.msra.mxu0 0
    %1809 = vmatprep.subr.bf16.mxu0 0
    %1810 = vmatpush1.bf16.msra.mxu0 0
    %1811 = vmatprep.subr.bf16.mxu0 0
    %1812 = vmatpush1.bf16.msra.mxu0 0
    %1813 = vmatprep.subr.bf16.mxu0 0
    %1814 = vmatpush1.bf16.msra.mxu0 0
    %1815 = vmatprep.mubr.bf16.mxu0 0
    %1816 = vmatmul.mubr.bf16.gmra.mrb[0].mxu0 %v1710
    %v1817 = vpop.f32.mrb[0].mxu0
    %v1818 = vadd.f32 0.0, %v1817
    %v1819 = vpop.f32.mrb[0].mxu0
    %v1820 = vpop.f32.mrb[0].mxu0
    %v1821 = vadd.f32 0.0, %v1820
    %v1822 = vpop.f32.mrb[0].mxu0
    %1823 = vmatprep.mubr.bf16.mxu0 0
    %1824 = vmatmul.mubr.bf16.gmra.mrb[0].mxu0 %v1711
    %v1825 = vpop.f32.mrb[0].mxu0
    %v1826 = vadd.f32 0.0, %v1825
    %v1827 = vpop.f32.mrb[0].mxu0
    %v1828 = vpop.f32.mrb[0].mxu0
    %v1829 = vadd.f32 0.0, %v1828
    %v1830 = vpop.f32.mrb[0].mxu0
    %1831 = vmatprep.mubr.bf16.mxu0 0
    %1832 = vmatmul.mubr.bf16.gmra.mrb[0].mxu0 %v1712
    %v1833 = vpop.f32.mrb[0].mxu0
    %v1834 = vadd.f32 0.0, %v1833
    %v1835 = vpop.f32.mrb[0].mxu0
    %v1836 = vpop.f32.mrb[0].mxu0
    %v1837 = vadd.f32 0.0, %v1836
    %v1838 = vpop.f32.mrb[0].mxu0
    %1839 = vmatprep.mubr.bf16.mxu0 0
    %1840 = vmatmul.mubr.bf16.gmra.mrb[0].mxu0 %v1713
    %v1841 = vpop.f32.mrb[0].mxu0
    %v1842 = vadd.f32 0.0, %v1841
    %v1843 = vpop.f32.mrb[0].mxu0
    %v1844 = vpop.f32.mrb[0].mxu0
    %v1845 = vadd.f32 0.0, %v1844
    %v1846 = vpop.f32.mrb[0].mxu0
    %1847 = vmatprep.mubr.bf16.mxu0 0
    %1848 = vmatmul.mubr.bf16.gmra.mrb[0].mxu0 %v1714
    %v1849 = vpop.f32.mrb[0].mxu0
    %v1850 = vadd.f32 0.0, %v1849
    %v1851 = vpop.f32.mrb[0].mxu0
    %v1852 = vpop.f32.mrb[0].mxu0
    %v1853 = vadd.f32 0.0, %v1852
    %v1854 = vpop.f32.mrb[0].mxu0
    %1855 = vmatprep.mubr.bf16.mxu0 0
    %1856 = vmatmul.mubr.bf16.gmra.mrb[0].mxu0 %v1715
    %v1857 = vpop.f32.mrb[0].mxu0
    %v1858 = vadd.f32 0.0, %v1857
    %v1859 = vpop.f32.mrb[0].mxu0
    %v1860 = vpop.f32.mrb[0].mxu0
    %v1861 = vadd.f32 0.0, %v1860
    %v1862 = vpop.f32.mrb[0].mxu0
    %1863 = vmatprep.mubr.bf16.mxu0 0
    %1864 = vmatmul.mubr.bf16.gmra.mrb[0].mxu0 %v1716
    %v1865 = vpop.f32.mrb[0].mxu0
    %v1866 = vadd.f32 0.0, %v1865
    %v1867 = vpop.f32.mrb[0].mxu0
    %v1868 = vpop.f32.mrb[0].mxu0
    %v1869 = vadd.f32 0.0, %v1868
    %v1870 = vpop.f32.mrb[0].mxu0
    %1871 = vmatprep.mubr.bf16.mxu0 0
    %1872 = vmatmul.mubr.bf16.gmra.mrb[0].mxu0 %v1717
    %v1873 = vpop.f32.mrb[0].mxu0
    %v1874 = vadd.f32 0.0, %v1873
    %v1875 = vpop.f32.mrb[0].mxu0
    %v1876 = vpop.f32.mrb[0].mxu0
    %v1877 = vadd.f32 0.0, %v1876
    %v1878 = vpop.f32.mrb[0].mxu0
    %1879 = vdwg.mxu0
    %v1896 = vunpack.c.l.b16 %v1694
    %v1897 = vunpack.c.l.b16 %v1695
    %v1898 = vunpack.c.l.b16 %v1696
    %v1899 = vunpack.c.l.b16 %v1697
    %v1900 = vunpack.c.l.b16 %v1698
    %v1901 = vunpack.c.l.b16 %v1699
    %v1902 = vunpack.c.l.b16 %v1700
    %v1903 = vunpack.c.l.b16 %v1701
    %v1904 = vunpack.c.l.b16 %v1702
    %v1905 = vunpack.c.l.b16 %v1703
    %v1906 = vunpack.c.l.b16 %v1704
    %v1907 = vunpack.c.l.b16 %v1705
    %v1908 = vunpack.c.l.b16 %v1706
    %v1909 = vunpack.c.l.b16 %v1707
    %v1910 = vunpack.c.l.b16 %v1708
    %v1911 = vunpack.c.l.b16 %v1709
    %v1912 = vpack.c.b16 %v1897, %v1896
    %v1913 = vpack.c.b16 %v1899, %v1898
    %v1914 = vpack.c.b16 %v1901, %v1900
    %v1915 = vpack.c.b16 %v1903, %v1902
    %v1916 = vpack.c.b16 %v1905, %v1904
    %v1917 = vpack.c.b16 %v1907, %v1906
    %v1918 = vpack.c.b16 %v1909, %v1908
    %v1919 = vpack.c.b16 %v1911, %v1910
    %1928 = vmatprep.subr.bf16.mxu0 0
    %1929 = vmatpush1.bf16.msra.mxu0 %v1912
    %1930 = vmatprep.subr.bf16.mxu0 0
    %1931 = vmatpush1.bf16.msra.mxu0 %v1913
    %1932 = vmatprep.subr.bf16.mxu0 0
    %1933 = vmatpush1.bf16.msra.mxu0 %v1914
    %1934 = vmatprep.subr.bf16.mxu0 0
    %1935 = vmatpush1.bf16.msra.mxu0 %v1915
    %1936 = vmatprep.subr.bf16.mxu0 0
    %1937 = vmatpush1.bf16.msra.mxu0 %v1916
    %1938 = vmatprep.subr.bf16.mxu0 0
    %1939 = vmatpush1.bf16.msra.mxu0 %v1917
    %1940 = vmatprep.subr.bf16.mxu0 0
    %1941 = vmatpush1.bf16.msra.mxu0 %v1918
    %1942 = vmatprep.subr.bf16.mxu0 0
    %1943 = vmatpush1.bf16.msra.mxu0 %v1919
    %1944 = vmatprep.subr.bf16.mxu0 0
    %1945 = vmatpush1.bf16.msra.mxu0 0
    %1946 = vmatprep.subr.bf16.mxu0 0
    %1947 = vmatpush1.bf16.msra.mxu0 0
    %1948 = vmatprep.subr.bf16.mxu0 0
    %1949 = vmatpush1.bf16.msra.mxu0 0
    %1950 = vmatprep.subr.bf16.mxu0 0
    %1951 = vmatpush1.bf16.msra.mxu0 0
    %1952 = vmatprep.subr.bf16.mxu0 0
    %1953 = vmatpush1.bf16.msra.mxu0 0
    %1954 = vmatprep.subr.bf16.mxu0 0
    %1955 = vmatpush1.bf16.msra.mxu0 0
    %1956 = vmatprep.subr.bf16.mxu0 0
    %1957 = vmatpush1.bf16.msra.mxu0 0
    %1958 = vmatprep.subr.bf16.mxu0 0
    %1959 = vmatpush1.bf16.msra.mxu0 0
    %1960 = vmatprep.mubr.bf16.mxu0 0
    %1961 = vmatmul.mubr.bf16.gmra.mrb[0].mxu0 %v1685
    %v1962 = vpop.f32.mrb[0].mxu0
    %v1963 = vadd.f32 %v1818, %v1962
    %v1964 = vpop.f32.mrb[0].mxu0
    %v1965 = vpop.f32.mrb[0].mxu0
    %v1966 = vadd.f32 %v1821, %v1965
    %v1967 = vpop.f32.mrb[0].mxu0
    %1968 = vmatprep.mubr.bf16.mxu0 0
    %1969 = vmatmul.mubr.bf16.gmra.mrb[0].mxu0 %v1686
    %v1970 = vpop.f32.mrb[0].mxu0
    %v1971 = vadd.f32 %v1826, %v1970
    %v1972 = vpop.f32.mrb[0].mxu0
    %v1973 = vpop.f32.mrb[0].mxu0
    %v1974 = vadd.f32 %v1829, %v1973
    %v1975 = vpop.f32.mrb[0].mxu0
    %1976 = vmatprep.mubr.bf16.mxu0 0
    %1977 = vmatmul.mubr.bf16.gmra.mrb[0].mxu0 %v1687
    %v1978 = vpop.f32.mrb[0].mxu0
    %v1979 = vadd.f32 %v1834, %v1978
    %v1980 = vpop.f32.mrb[0].mxu0
    %v1981 = vpop.f32.mrb[0].mxu0
    %v1982 = vadd.f32 %v1837, %v1981
    %v1983 = vpop.f32.mrb[0].mxu0
    %1984 = vmatprep.mubr.bf16.mxu0 0
    %1985 = vmatmul.mubr.bf16.gmra.mrb[0].mxu0 %v1688
    %v1986 = vpop.f32.mrb[0].mxu0
    %v1987 = vadd.f32 %v1842, %v1986
    %v1988 = vpop.f32.mrb[0].mxu0
    %v1989 = vpop.f32.mrb[0].mxu0
    %v1990 = vadd.f32 %v1845, %v1989
    %v1991 = vpop.f32.mrb[0].mxu0
    %1992 = vmatprep.mubr.bf16.mxu0 0
    %1993 = vmatmul.mubr.bf16.gmra.mrb[0].mxu0 %v1689
    %v1994 = vpop.f32.mrb[0].mxu0
    %v1995 = vadd.f32 %v1850, %v1994
    %v1996 = vpop.f32.mrb[0].mxu0
    %v1997 = vpop.f32.mrb[0].mxu0
    %v1998 = vadd.f32 %v1853, %v1997
    %v1999 = vpop.f32.mrb[0].mxu0
    %2000 = vmatprep.mubr.bf16.mxu0 0
    %2001 = vmatmul.mubr.bf16.gmra.mrb[0].mxu0 %v1690
    %v2002 = vpop.f32.mrb[0].mxu0
    %v2003 = vadd.f32 %v1858, %v2002
    %v2004 = vpop.f32.mrb[0].mxu0
    %v2005 = vpop.f32.mrb[0].mxu0
    %v2006 = vadd.f32 %v1861, %v2005
    %v2007 = vpop.f32.mrb[0].mxu0
    %2008 = vmatprep.mubr.bf16.mxu0 0
    %2009 = vmatmul.mubr.bf16.gmra.mrb[0].mxu0 %v1691
    %v2010 = vpop.f32.mrb[0].mxu0
    %v2011 = vadd.f32 %v1866, %v2010
    %v2012 = vpop.f32.mrb[0].mxu0
    %v2013 = vpop.f32.mrb[0].mxu0
    %v2014 = vadd.f32 %v1869, %v2013
    %v2015 = vpop.f32.mrb[0].mxu0
    %2016 = vmatprep.mubr.bf16.mxu0 0
    %2017 = vmatmul.mubr.bf16.gmra.mrb[0].mxu0 %v1692
    %v2018 = vpop.f32.mrb[0].mxu0
    %v2019 = vadd.f32 %v1874, %v2018
    %v2020 = vpop.f32.mrb[0].mxu0
    %v2021 = vpop.f32.mrb[0].mxu0
    %v2022 = vadd.f32 %v1877, %v2021
    %v2023 = vpop.f32.mrb[0].mxu0
    %2024 = vdwg.mxu0
    %v2025 = vpack.c.bf16 %v1669, %v1668
    %v2026 = vpack.c.bf16 %v1671, %v1670
    %v2027 = vpack.c.bf16 %v1673, %v1672
    %v2028 = vpack.c.bf16 %v1683, %v1674
    %v2029 = vpack.c.bf16 %v1677, %v1676
    %v2030 = vpack.c.bf16 %v1679, %v1678
    %v2031 = vpack.c.bf16 %v1681, %v1680
    %v2032 = vpack.c.bf16 %v1684, %v1682
    %s2033 = scalar_lea.vmem [#allocation6], 512
    %v2034 = vld [vmem:[%s2033] sm:$0xf]
    %v2035 = vld [vmem:[%s2033 + $0x4] sm:$0xf]
    %v2036 = vld [vmem:[%s2033 + $0x8] sm:$0xf]
    %v2037 = vld [vmem:[%s2033 + $0xc] sm:$0xf]
    %v2038 = vld [vmem:[%s2033 + $0x10] sm:$0xf]
    %v2039 = vld [vmem:[%s2033 + $0x14] sm:$0xf]
    %v2040 = vld [vmem:[%s2033 + $0x18] sm:$0xf]
    %v2041 = vld [vmem:[%s2033 + $0x1c] sm:$0xf]
    %v2042 = vld [vmem:[%s2033 + $0x20] sm:$0xf]
    %v2043 = vld [vmem:[%s2033 + $0x24] sm:$0xf]
    %v2044 = vld [vmem:[%s2033 + $0x28] sm:$0xf]
    %v2045 = vld [vmem:[%s2033 + $0x2c] sm:$0xf]
    %v2046 = vld [vmem:[%s2033 + $0x30] sm:$0xf]
    %v2047 = vld [vmem:[%s2033 + $0x34] sm:$0xf]
    %v2048 = vld [vmem:[%s2033 + $0x38] sm:$0xf]
    %v2049 = vld [vmem:[%s2033 + $0x3c] sm:$0xf]
    %v2066 = vunpack.c.l.b16 %v2034
    %v2067 = vunpack.c.l.b16 %v2035
    %v2068 = vunpack.c.l.b16 %v2036
    %v2069 = vunpack.c.l.b16 %v2037
    %v2070 = vunpack.c.l.b16 %v2038
    %v2071 = vunpack.c.l.b16 %v2039
    %v2072 = vunpack.c.l.b16 %v2040
    %v2073 = vunpack.c.l.b16 %v2041
    %v2074 = vunpack.c.l.b16 %v2042
    %v2075 = vunpack.c.l.b16 %v2043
    %v2076 = vunpack.c.l.b16 %v2044
    %v2077 = vunpack.c.l.b16 %v2045
    %v2078 = vunpack.c.l.b16 %v2046
    %v2079 = vunpack.c.l.b16 %v2047
    %v2080 = vunpack.c.l.b16 %v2048
    %v2081 = vunpack.c.l.b16 %v2049
    %v2082 = vpack.c.b16 %v2067, %v2066
    %v2083 = vpack.c.b16 %v2069, %v2068
    %v2084 = vpack.c.b16 %v2071, %v2070
    %v2085 = vpack.c.b16 %v2073, %v2072
    %v2086 = vpack.c.b16 %v2075, %v2074
    %v2087 = vpack.c.b16 %v2077, %v2076
    %v2088 = vpack.c.b16 %v2079, %v2078
    %v2089 = vpack.c.b16 %v2081, %v2080
    %2098 = vmatprep.subr.bf16.mxu0 0
    %2099 = vmatpush1.bf16.msra.mxu0 %v2082
    %2100 = vmatprep.subr.bf16.mxu0 0
    %2101 = vmatpush1.bf16.msra.mxu0 %v2083
    %2102 = vmatprep.subr.bf16.mxu0 0
    %2103 = vmatpush1.bf16.msra.mxu0 %v2084
    %2104 = vmatprep.subr.bf16.mxu0 0
    %2105 = vmatpush1.bf16.msra.mxu0 %v2085
    %2106 = vmatprep.subr.bf16.mxu0 0
    %2107 = vmatpush1.bf16.msra.mxu0 %v2086
    %2108 = vmatprep.subr.bf16.mxu0 0
    %2109 = vmatpush1.bf16.msra.mxu0 %v2087
    %2110 = vmatprep.subr.bf16.mxu0 0
    %2111 = vmatpush1.bf16.msra.mxu0 %v2088
    %2112 = vmatprep.subr.bf16.mxu0 0
    %2113 = vmatpush1.bf16.msra.mxu0 %v2089
    %2114 = vmatprep.subr.bf16.mxu0 0
    %2115 = vmatpush1.bf16.msra.mxu0 0
    %2116 = vmatprep.subr.bf16.mxu0 0
    %2117 = vmatpush1.bf16.msra.mxu0 0
    %2118 = vmatprep.subr.bf16.mxu0 0
    %2119 = vmatpush1.bf16.msra.mxu0 0
    %2120 = vmatprep.subr.bf16.mxu0 0
    %2121 = vmatpush1.bf16.msra.mxu0 0
    %2122 = vmatprep.subr.bf16.mxu0 0
    %2123 = vmatpush1.bf16.msra.mxu0 0
    %2124 = vmatprep.subr.bf16.mxu0 0
    %2125 = vmatpush1.bf16.msra.mxu0 0
    %2126 = vmatprep.subr.bf16.mxu0 0
    %2127 = vmatpush1.bf16.msra.mxu0 0
    %2128 = vmatprep.subr.bf16.mxu0 0
    %2129 = vmatpush1.bf16.msra.mxu0 0
    %2130 = vmatprep.mubr.bf16.mxu0 0
    %2131 = vmatmul.mubr.bf16.gmra.mrb[0].mxu0 %v2025
    %v2132 = vpop.f32.mrb[0].mxu0
    %v2133 = vadd.f32 0.0, %v2132
    %v2134 = vpop.f32.mrb[0].mxu0
    %v2135 = vpop.f32.mrb[0].mxu0
    %v2136 = vadd.f32 0.0, %v2135
    %v2137 = vpop.f32.mrb[0].mxu0
    %2138 = vmatprep.mubr.bf16.mxu0 0
    %2139 = vmatmul.mubr.bf16.gmra.mrb[0].mxu0 %v2026
    %v2140 = vpop.f32.mrb[0].mxu0
    %v2141 = vadd.f32 0.0, %v2140
    %v2142 = vpop.f32.mrb[0].mxu0
    %v2143 = vpop.f32.mrb[0].mxu0
    %v2144 = vadd.f32 0.0, %v2143
    %v2145 = vpop.f32.mrb[0].mxu0
    %2146 = vmatprep.mubr.bf16.mxu0 0
    %2147 = vmatmul.mubr.bf16.gmra.mrb[0].mxu0 %v2027
    %v2148 = vpop.f32.mrb[0].mxu0
    %v2149 = vadd.f32 0.0, %v2148
    %v2150 = vpop.f32.mrb[0].mxu0
    %v2151 = vpop.f32.mrb[0].mxu0
    %v2152 = vadd.f32 0.0, %v2151
    %v2153 = vpop.f32.mrb[0].mxu0
    %2154 = vmatprep.mubr.bf16.mxu0 0
    %2155 = vmatmul.mubr.bf16.gmra.mrb[0].mxu0 %v2028
    %v2156 = vpop.f32.mrb[0].mxu0
    %v2157 = vadd.f32 0.0, %v2156
    %v2158 = vpop.f32.mrb[0].mxu0
    %v2159 = vpop.f32.mrb[0].mxu0
    %v2160 = vadd.f32 0.0, %v2159
    %v2161 = vpop.f32.mrb[0].mxu0
    %2162 = vmatprep.mubr.bf16.mxu0 0
    %2163 = vmatmul.mubr.bf16.gmra.mrb[0].mxu0 %v2029
    %v2164 = vpop.f32.mrb[0].mxu0
    %v2165 = vadd.f32 0.0, %v2164
    %v2166 = vpop.f32.mrb[0].mxu0
    %v2167 = vpop.f32.mrb[0].mxu0
    %v2168 = vadd.f32 0.0, %v2167
    %v2169 = vpop.f32.mrb[0].mxu0
    %2170 = vmatprep.mubr.bf16.mxu0 0
    %2171 = vmatmul.mubr.bf16.gmra.mrb[0].mxu0 %v2030
    %v2172 = vpop.f32.mrb[0].mxu0
    %v2173 = vadd.f32 0.0, %v2172
    %v2174 = vpop.f32.mrb[0].mxu0
    %v2175 = vpop.f32.mrb[0].mxu0
    %v2176 = vadd.f32 0.0, %v2175
    %v2177 = vpop.f32.mrb[0].mxu0
    %2178 = vmatprep.mubr.bf16.mxu0 0
    %2179 = vmatmul.mubr.bf16.gmra.mrb[0].mxu0 %v2031
    %v2180 = vpop.f32.mrb[0].mxu0
    %v2181 = vadd.f32 0.0, %v2180
    %v2182 = vpop.f32.mrb[0].mxu0
    %v2183 = vpop.f32.mrb[0].mxu0
    %v2184 = vadd.f32 0.0, %v2183
    %v2185 = vpop.f32.mrb[0].mxu0
    %2186 = vmatprep.mubr.bf16.mxu0 0
    %2187 = vmatmul.mubr.bf16.gmra.mrb[0].mxu0 %v2032
    %v2188 = vpop.f32.mrb[0].mxu0
    %v2189 = vadd.f32 0.0, %v2188
    %v2190 = vpop.f32.mrb[0].mxu0
    %v2191 = vpop.f32.mrb[0].mxu0
    %v2192 = vadd.f32 0.0, %v2191
    %v2193 = vpop.f32.mrb[0].mxu0
    %2194 = vdwg.mxu0
    %v2195 = vadd.f32 %v1963, %v2133
    %v2196 = vadd.f32 %v1966, %v2136
    %v2197 = vadd.f32 %v1971, %v2141
    %v2198 = vadd.f32 %v1974, %v2144
    %v2199 = vadd.f32 %v1979, %v2149
    %v2200 = vadd.f32 %v1982, %v2152
    %v2201 = vadd.f32 %v1987, %v2157
    %v2202 = vadd.f32 %v1990, %v2160
    %v2203 = vadd.f32 %v1995, %v2165
    %v2204 = vadd.f32 %v1998, %v2168
    %v2205 = vadd.f32 %v2003, %v2173
    %v2206 = vadd.f32 %v2006, %v2176
    %v2207 = vadd.f32 %v2011, %v2181
    %v2208 = vadd.f32 %v2014, %v2184
    %v2209 = vadd.f32 %v2019, %v2189
    %v2210 = vadd.f32 %v2022, %v2192
    %v2211 = vlaneseq
    %v2212 = vshrl.u32 %v2211, 7
    %v2213 = vsub.s32 0, %v2212
    %v2214 = vrot.slane %v1650, %v2213
    %v2215 = vadd.f32 %v2195, %v2214
    %v2216 = vadd.f32 %v2196, %v2214
    %v2217 = vadd.f32 %v2197, %v2214
    %v2218 = vadd.f32 %v2198, %v2214
    %v2219 = vadd.f32 %v2199, %v2214
    %v2220 = vadd.f32 %v2200, %v2214
    %v2221 = vadd.f32 %v2201, %v2214
    %v2222 = vadd.f32 %v2202, %v2214
    %v2223 = vadd.f32 %v2203, %v2214
    %v2224 = vadd.f32 %v2204, %v2214
    %v2225 = vadd.f32 %v2205, %v2214
    %v2226 = vadd.f32 %v2206, %v2214
    %v2227 = vadd.f32 %v2207, %v2214
    %v2228 = vadd.f32 %v2208, %v2214
    %v2229 = vadd.f32 %v2209, %v2214
    %v2230 = vadd.f32 %v2210, %v2214
    %v2231 = vadd.f32 %v2215, %v1651
    %v2232 = vadd.f32 %v2216, %v1652
    %v2233 = vadd.f32 %v2217, %v1653
    %v2234 = vadd.f32 %v2218, %v1654
    %v2235 = vadd.f32 %v2219, %v1655
    %v2236 = vadd.f32 %v2220, %v1656
    %v2237 = vadd.f32 %v2221, %v1657
    %v2238 = vadd.f32 %v2222, %v1658
    %v2239 = vadd.f32 %v2223, %v1659
    %v2240 = vadd.f32 %v2224, %v1660
    %v2241 = vadd.f32 %v2225, %v1661
    %v2242 = vadd.f32 %v2226, %v1662
    %v2243 = vadd.f32 %v2227, %v1663
    %v2244 = vadd.f32 %v2228, %v1664
    %v2245 = vadd.f32 %v2229, %v1665
    %v2246 = vadd.f32 %v2230, %v1666
    %v2247 = vmul.f32 %v2231, 0.2
    %v2248 = vmul.f32 %v2232, 0.2
    %v2249 = vmul.f32 %v2233, 0.2
    %v2250 = vmul.f32 %v2234, 0.2
    %v2251 = vmul.f32 %v2235, 0.2
    %v2252 = vmul.f32 %v2236, 0.2
    %v2253 = vmul.f32 %v2237, 0.2
    %v2254 = vmul.f32 %v2238, 0.2
    %v2255 = vmul.f32 %v2239, 0.2
    %v2256 = vmul.f32 %v2240, 0.2
    %v2257 = vmul.f32 %v2241, 0.2
    %v2258 = vmul.f32 %v2242, 0.2
    %v2259 = vmul.f32 %v2243, 0.2
    %v2260 = vmul.f32 %v2244, 0.2
    %v2261 = vmul.f32 %v2245, 0.2
    %v2262 = vmul.f32 %v2246, 0.2
    %v2263 = vmax.f32 %v2231, %v2247
    %v2264 = vmax.f32 %v2232, %v2248
    %v2265 = vmax.f32 %v2233, %v2249
    %v2266 = vmax.f32 %v2234, %v2250
    %v2267 = vmax.f32 %v2235, %v2251
    %v2268 = vmax.f32 %v2236, %v2252
    %v2269 = vmax.f32 %v2237, %v2253
    %v2270 = vmax.f32 %v2238, %v2254
    %v2271 = vmax.f32 %v2239, %v2255
    %v2272 = vmax.f32 %v2240, %v2256
    %v2273 = vmax.f32 %v2241, %v2257
    %v2274 = vmax.f32 %v2242, %v2258
    %v2275 = vmax.f32 %v2243, %v2259
    %v2276 = vmax.f32 %v2244, %v2260
    %v2277 = vmax.f32 %v2245, %v2261
    %v2278 = vmax.f32 %v2246, %v2262
    %v2279 = vadd.f32 %v2263, %v2264
    %v2280 = vadd.f32 %v2279, %v2265
    %v2281 = vadd.f32 %v2280, %v2266
    %v2282 = vadd.f32 %v2281, %v2267
    %v2283 = vadd.f32 %v2282, %v2268
    %v2284 = vadd.f32 %v2283, %v2269
    %v2285 = vadd.f32 %v2284, %v2270
    %v2286 = vadd.f32 %v2285, %v2271
    %v2287 = vadd.f32 %v2286, %v2272
    %v2288 = vadd.f32 %v2287, %v2273
    %v2289 = vadd.f32 %v2288, %v2274
    %v2290 = vadd.f32 %v2289, %v2275
    %v2291 = vadd.f32 %v2290, %v2276
    %v2292 = vadd.f32 %v2291, %v2277
    %v2293 = vadd.f32 %v2292, %v2278
    %v2294 = vrot.slane %v2293, 4
    %v2295 = vadd.f32 %v2293, %v2294
    %v2296 = vrot.slane %v2295, 2
    %v2297 = vadd.f32 %v2295, %v2296
    %v2298 = vrot.slane %v2297, 1
    %v2299 = vadd.f32 %v2297, %v2298
    %v2300 = vmul.f32 %v2299, 0.0078125
    %v2301 = vsub.f32 %v2263, %v2300
    %v2302 = vsub.f32 %v2264, %v2300
    %v2303 = vsub.f32 %v2265, %v2300
    %v2304 = vsub.f32 %v2266, %v2300
    %v2305 = vsub.f32 %v2267, %v2300
    %v2306 = vsub.f32 %v2268, %v2300
    %v2307 = vsub.f32 %v2269, %v2300
    %v2308 = vsub.f32 %v2270, %v2300
    %v2309 = vsub.f32 %v2271, %v2300
    %v2310 = vsub.f32 %v2272, %v2300
    %v2311 = vsub.f32 %v2273, %v2300
    %v2312 = vsub.f32 %v2274, %v2300
    %v2313 = vsub.f32 %v2275, %v2300
    %v2314 = vsub.f32 %v2276, %v2300
    %v2315 = vsub.f32 %v2277, %v2300
    %v2316 = vsub.f32 %v2278, %v2300
    %v2317 = vmul.f32 %v2301, %v2301
    %v2318 = vmul.f32 %v2302, %v2302
    %v2319 = vmul.f32 %v2303, %v2303
    %v2320 = vmul.f32 %v2304, %v2304
    %v2321 = vmul.f32 %v2305, %v2305
    %v2322 = vmul.f32 %v2306, %v2306
    %v2323 = vmul.f32 %v2307, %v2307
    %v2324 = vmul.f32 %v2308, %v2308
    %v2325 = vmul.f32 %v2309, %v2309
    %v2326 = vmul.f32 %v2310, %v2310
    %v2327 = vmul.f32 %v2311, %v2311
    %v2328 = vmul.f32 %v2312, %v2312
    %v2329 = vmul.f32 %v2313, %v2313
    %v2330 = vmul.f32 %v2314, %v2314
    %v2331 = vmul.f32 %v2315, %v2315
    %v2332 = vmul.f32 %v2316, %v2316
    %v2333 = vadd.f32 %v2317, %v2318
    %v2334 = vadd.f32 %v2333, %v2319
    %v2335 = vadd.f32 %v2334, %v2320
    %v2336 = vadd.f32 %v2335, %v2321
    %v2337 = vadd.f32 %v2336, %v2322
    %v2338 = vadd.f32 %v2337, %v2323
    %v2339 = vadd.f32 %v2338, %v2324
    %v2340 = vadd.f32 %v2339, %v2325
    %v2341 = vadd.f32 %v2340, %v2326
    %v2342 = vadd.f32 %v2341, %v2327
    %v2343 = vadd.f32 %v2342, %v2328
    %v2344 = vadd.f32 %v2343, %v2329
    %v2345 = vadd.f32 %v2344, %v2330
    %v2346 = vadd.f32 %v2345, %v2331
    %v2347 = vadd.f32 %v2346, %v2332
    %v2348 = vrot.slane %v2347, 4
    %v2349 = vadd.f32 %v2347, %v2348
    %v2350 = vrot.slane %v2349, 2
    %v2351 = vadd.f32 %v2349, %v2350
    %v2352 = vrot.slane %v2351, 1
    %v2353 = vadd.f32 %v2351, %v2352
    %v2354 = vmul.f32 %v2353, 0.0078125
    %v2355 = vadd.f32 %v2354, 1e-05
    %v2356 = vrsqrt.pop %v2355
    %v2357 = vmul.f32 %v2356, %v1650
    %v2358 = vlaneseq
    %v2359 = vshrl.u32 %v2358, 7
    %v2360 = vsub.s32 1, %v2359
    %v2361 = vrot.slane %v2357, %v2360
    %v2362 = vmul.f32 %v2301, %v2361
    %v2363 = vmul.f32 %v2302, %v2361
    %v2364 = vmul.f32 %v2303, %v2361
    %v2365 = vmul.f32 %v2304, %v2361
    %v2366 = vmul.f32 %v2305, %v2361
    %v2367 = vmul.f32 %v2306, %v2361
    %v2368 = vmul.f32 %v2307, %v2361
    %v2369 = vmul.f32 %v2308, %v2361
    %v2370 = vmul.f32 %v2309, %v2361
    %v2371 = vmul.f32 %v2310, %v2361
    %v2372 = vmul.f32 %v2311, %v2361
    %v2373 = vmul.f32 %v2312, %v2361
    %v2374 = vmul.f32 %v2313, %v2361
    %v2375 = vmul.f32 %v2314, %v2361
    %v2376 = vmul.f32 %v2315, %v2361
    %v2377 = vmul.f32 %v2316, %v2361
    %v2378 = vlaneseq
    %v2379 = vshrl.u32 %v2378, 7
    %v2380 = vsub.s32 2, %v2379
    %v2381 = vrot.slane %v1650, %v2380
    %v2382 = vadd.f32 %v2362, %v2381
    %v2383 = vadd.f32 %v2363, %v2381
    %v2384 = vadd.f32 %v2364, %v2381
    %v2385 = vadd.f32 %v2365, %v2381
    %v2386 = vadd.f32 %v2366, %v2381
    %v2387 = vadd.f32 %v2367, %v2381
    %v2388 = vadd.f32 %v2368, %v2381
    %v2389 = vadd.f32 %v2369, %v2381
    %v2390 = vadd.f32 %v2370, %v2381
    %v2391 = vadd.f32 %v2371, %v2381
    %v2392 = vadd.f32 %v2372, %v2381
    %v2393 = vadd.f32 %v2373, %v2381
    %v2394 = vadd.f32 %v2374, %v2381
    %v2395 = vadd.f32 %v2375, %v2381
    %v2396 = vadd.f32 %v2376, %v2381
    %v2397 = vadd.f32 %v2377, %v2381
    %2398 = vst [vmem:[#allocation9] sm:$0xff] %v2382
    %2399 = vst [vmem:[#allocation9 + $0x8] sm:$0xff] %v2383
    %2400 = vst [vmem:[#allocation9 + $0x10] sm:$0xff] %v2384
    %2401 = vst [vmem:[#allocation9 + $0x18] sm:$0xff] %v2385
    %2402 = vst [vmem:[#allocation9 + $0x20] sm:$0xff] %v2386
    %2403 = vst [vmem:[#allocation9 + $0x28] sm:$0xff] %v2387
    %2404 = vst [vmem:[#allocation9 + $0x30] sm:$0xff] %v2388
    %2405 = vst [vmem:[#allocation9 + $0x38] sm:$0xff] %v2389
    %2406 = vst [vmem:[#allocation9 + $0x40] sm:$0xff] %v2390
    %2407 = vst [vmem:[#allocation9 + $0x48] sm:$0xff] %v2391
    %2408 = vst [vmem:[#allocation9 + $0x50] sm:$0xff] %v2392
    %2409 = vst [vmem:[#allocation9 + $0x58] sm:$0xff] %v2393
    %2410 = vst [vmem:[#allocation9 + $0x60] sm:$0xff] %v2394
    %2411 = vst [vmem:[#allocation9 + $0x68] sm:$0xff] %v2395
    %2412 = vst [vmem:[#allocation9 + $0x70] sm:$0xff] %v2396
    %2413 = vst [vmem:[#allocation9 + $0x78] sm:$0xff] %v2397
    // Predicated region
    $region26: #{tpu_custom_call.1} parent=1 // pred_check
      _
    $region27: #{tpu_custom_call.1} parent=1 // pred_check_branch
      %2415 = sbr.rel (0) target = $region29
    $region28: #{tpu_custom_call.1} parent=1 // pred_region
      %s2417 = ssub.s32 2048, 2048
      %2418 = vsyncadd [#allocation5], %s2417
      %s2419 = sshll.u32 [#allocation9], 4
      %s2420 = int_to_ptr.vmem [resolvable:$true] %s2419
      %2425 = dma.vmem_to_hbm [thread:$0]  %s2420, 2048, %s3, [#allocation5], 128, 128, 8
    $region29: #{tpu_custom_call.1} parent=1 // pred_fallthru
      _
    // Predicated region
    $region30: #{tpu_custom_call.1} parent=1 // pred_check
      _
    $region31: #{tpu_custom_call.1} parent=1 // pred_check_branch
      %2427 = sbr.rel (0) target = $region33
    $region32: #{tpu_custom_call.1} parent=1 // pred_region
      %2428 = dma.done [#allocation5], 2048
    $region33: #{tpu_custom_call.1} parent=1 // pred_fallthru
      _
    %2429 = vsyncpa [#allocation4], 1
    %2430 = vsyncpa [#allocation7], 1
    %2431 = vsyncpa [#allocation5], 1

</llo_original>
